<compile_context>
chip_gen: v7x
topology: tpu7x:2x2x1
jax: 0.10.0
libtpu: 0.0.40
codegen_flags: <defaults>
</compile_context>

<pallas_src>
import jax
import jax.numpy as jnp
from jax import lax
from jax.experimental import pallas as pl
from jax.experimental.pallas import tpu as pltpu


def _choose_tiles(n, cout, ho, wp, acc_budget_bytes=96 * 1024):
    """Pick (Cout tile, output-row tile).

    The binding constraint is the live f32 accumulator (tco, th*wp): it must
    fit comfortably in the 256 KiB vector-register file (review item #1), so
    we cap it at ~96 KiB.  tco keeps Cout whole when small, otherwise an
    MXU-M-friendly divisor; th is a divisor of Ho (multiple of 8, or Ho
    itself) so output blocks tile the final NCHW array exactly.
    """
    tco = cout
    if cout > 128:
        for d in (128, 64, 32, 16, 8):
            if cout % d == 0:
                tco = d
                break
    cands = sorted({ho} | {d for d in range(8, ho, 8) if ho % d == 0},
                   reverse=True)
    th = cands[-1]                       # smallest candidate as fallback
    for c in cands:
        if tco * c * wp * 4 <= acc_budget_bytes:
            th = c
            break
    # v7x has 2 TensorCores: make sure there are >=2 grid steps to shard.
    if n * (cout // tco) * (ho // th) < 2:
        smaller = [c for c in cands if c < th]
        if smaller:
            th = smaller[0]
    return tco, th


def _make_kernel(kh, kw, wp, wo, th, cin, stride, p_out, apply_relu, nrb,
                 row_step_flat):
    """Kernel for one (image, cout-block, row-block) grid step.

    Refs:
      x_ref:     (1, Cin, RowsTot*Wp)  bf16  whole padded image, flat pixels
                                             (resident across co / rb steps)
      w_ref:     (tco, KH*KW*Cin)      bf16  BN-scale-folded weight, lane-K
      shift_ref: (tco, 1)              f32   folded bias/BN shift
      o_ref:     (1, tco, th, Wo)      bf16  final NCHW output tile
    """
    slab_w = p_out + kw - 1

    def kernel(x_ref, w_ref, shift_ref, o_ref):
        tco = o_ref.shape[1]
        if nrb == 1:
            base = 0                      # static offset on the exercised path
        else:
            # TODO(synk): dynamic (program_id-dependent) lane-offset slab reads
            #             are not exercised by the test below (nrb == 1 there).
            base = pl.multiple_of(pl.program_id(2) * row_step_flat, wp)

        # Fold the affine shift into the accumulator init (saves a VPU add).
        acc = jnp.broadcast_to(shift_ref[...], (tco, p_out)).astype(jnp.float32)

        if stride == 1:
            # Hoisted per-row slab load: KH unaligned loads instead of KH*KW;
            # the KW column taps are static sub-slices of the slab.
            for dh in range(kh):
                start = base + dh * wp
                if isinstance(start, int):
                    slab = x_ref[0, :, start:start + slab_w]       # (Cin, slab_w)
                else:
                    slab = x_ref[0, :, pl.ds(start, slab_w)]
                for dw in range(kw):
                    t = dh * kw + dw
                    wt = w_ref[:, t * cin:(t + 1) * cin]           # (tco, Cin)
                    acc = acc + jnp.dot(wt, slab[:, dw:dw + p_out],
                                        preferred_element_type=jnp.float32)
        else:
            # TODO(synk): stride > 1 path (strided lane reads per tap) is not
            #             exercised by the test below (stride == 1 there).
            for dh in range(kh):
                for dw in range(kw):
                    t = dh * kw + dw
                    wt = w_ref[:, t * cin:(t + 1) * cin]
                    xs = x_ref[0, :, pl.ds(base + dh * wp + dw, p_out, stride)]
                    acc = acc + jnp.dot(wt, xs,
                                        preferred_element_type=jnp.float32)

        if apply_relu:
            acc = jnp.maximum(acc, 0.0)
        acc = acc.astype(o_ref.dtype)

        # Store straight into the final NCHW layout — no wrapper transpose and
        # no wrapper crop pass.  Output row r of this tile lives in lanes
        # [r*Wp, r*Wp + Wo) of acc; the "wide" columns >= Wo are never stored.
        for r in range(th):
            o_ref[0, :, r, :] = acc[:, r * wp:r * wp + wo]

    return kernel


def conv_bn_relu_pallas(x, weight, bias, gamma, beta, running_mean, running_var,
                        *, stride, padding, eps=1e-5, has_bn=True, has_relu=True,
                        out_dtype=jnp.bfloat16):
    """relu(bn(conv2d(x))) with inference-mode BN.  NCHW in, NCHW out."""
    n, cin, h, w = x.shape
    cout, cin_w, kh, kw = weight.shape
    assert cin_w == cin
    ho = (h + 2 * padding - kh) // stride + 1
    wo = (w + 2 * padding - kw) // stride + 1
    wp = w + 2 * padding
    hp = h + 2 * padding

    f32 = jnp.float32
    weight = weight.astype(f32)
    bias_f = jnp.zeros((cout,), f32) if bias is None else bias.astype(f32)
    if has_bn:
        scale = gamma.astype(f32) / jnp.sqrt(running_var.astype(f32) + eps)
        shift = beta.astype(f32) + scale * (bias_f - running_mean.astype(f32))
    else:
        scale = jnp.ones((cout,), f32)
        shift = bias_f

    # BN scale folded into the conv weight; lane-contiguous K layout
    # (Cout, KH*KW*Cin) so per-tap reads are cheap slices of a resident block.
    w_folded = weight * scale[:, None, None, None]                 # (Co,Ci,KH,KW)
    w_flat = jnp.transpose(w_folded, (0, 2, 3, 1)).reshape(cout, kh * kw * cin)
    w_flat = w_flat.astype(jnp.bfloat16)
    shift2d = shift.reshape(cout, 1)

    tco, th = _choose_tiles(n, cout, ho, wp)
    ncb, nrb = cout // tco, ho // th
    p_out = th * wp
    # Rows needed so every (discarded) wide-column tap read stays in bounds.
    rows_in = nrb * th * stride + kh
    rows_tot = max(rows_in, hp)

    # Single padding pass, done directly in bf16 (halves the pad-pass traffic
    # vs padding in f32); the extra bottom rows absorb the halo/tap overrun.
    # TODO(synk): fold zero-padding into the kernel's DMA to remove this pass.
    xp = jnp.pad(x.astype(jnp.bfloat16),
                 ((0, 0), (0, 0),
                  (padding, padding + (rows_tot - hp)),
                  (padding, padding)))
    # Flatten (rows, Wp) into one "wide pixel" axis — contiguous, free reshape.
    xp = xp.reshape(n, cin, rows_tot * wp)

    kernel = _make_kernel(kh, kw, wp, wo, th, cin, stride, p_out, has_relu,
                          nrb, th * stride * wp)

    flops = 2 * n * cout * nrb * p_out * cin * kh * kw
    bytes_accessed = (xp.size * 2 + w_flat.size * 2 + shift2d.size * 4
                      + n * cout * ho * wo * jnp.dtype(out_dtype).itemsize)

    out = pl.pallas_call(
        kernel,
        out_shape=jax.ShapeDtypeStruct((n, cout, ho, wo), out_dtype),
        grid=(n, ncb, nrb),
        in_specs=[
            # Whole padded image per batch index: index map depends only on i,
            # so the block stays resident (no re-DMA) across co / rb steps.
            pl.BlockSpec((1, cin, rows_tot * wp), lambda i, co, rb: (i, 0, 0)),
            pl.BlockSpec((tco, kh * kw * cin), lambda i, co, rb: (co, 0)),
            pl.BlockSpec((tco, 1), lambda i, co, rb: (co, 0)),
        ],
        out_specs=pl.BlockSpec((1, tco, th, wo),
                               lambda i, co, rb: (i, co, rb, 0)),
        compiler_params=pltpu.CompilerParams(
            dimension_semantics=("parallel", "parallel", "parallel"),
            vmem_limit_bytes=32 * 1024 * 1024),
        cost_estimate=pl.CostEstimate(
            flops=flops, transcendentals=0, bytes_accessed=bytes_accessed),
    )(xp, w_flat, shift2d)
    return out


def _reference_f32(x, weight, bias, gamma, beta, mean, var, *, stride, padding,
                   eps=1e-5, has_bn=True, has_relu=True):
    y = lax.conv_general_dilated(
        x.astype(jnp.float32), weight.astype(jnp.float32),
        window_strides=(stride, stride),
        padding=((padding, padding), (padding, padding)),
        dimension_numbers=("NCHW", "OIHW", "NCHW"),
        precision=lax.Precision.HIGHEST)
    y = y + bias[None, :, None, None]
    if has_bn:
        y = (y - mean[None, :, None, None]) / jnp.sqrt(var[None, :, None, None] + eps)
        y = y * gamma[None, :, None, None] + beta[None, :, None, None]
    if has_relu:
        y = jnp.maximum(y, 0.0)
    return y


if __name__ == "__main__":
    # conv_bn_relu(in_planes=4, out_planes=8, kernel_size=3, stride=1, padding=1)
    N, CIN, H, W = 2, 4, 16, 16
    COUT, KH, KW = 8, 3, 3
    STRIDE, PAD = 1, 1
    EPS = 1e-5

    key = jax.random.PRNGKey(0)
    kx, kw_, kb, kg, kbe, km, kv = jax.random.split(key, 7)
    x = jax.random.normal(kx, (N, CIN, H, W), jnp.float32)
    weight = jax.random.normal(kw_, (COUT, CIN, KH, KW), jnp.float32) * 0.1
    bias = jax.random.normal(kb, (COUT,), jnp.float32) * 0.1
    gamma = jax.random.normal(kg, (COUT,), jnp.float32) * 0.1 + 1.0
    beta = jax.random.normal(kbe, (COUT,), jnp.float32) * 0.1
    running_mean = jax.random.normal(km, (COUT,), jnp.float32) * 0.1
    running_var = jnp.abs(jax.random.normal(kv, (COUT,), jnp.float32)) * 0.5 + 0.5

    out = conv_bn_relu_pallas(x, weight, bias, gamma, beta, running_mean,
                              running_var, stride=STRIDE, padding=PAD, eps=EPS)
    out = jax.block_until_ready(out)
    assert out.shape == (N, COUT, H, W), out.shape
    out_f32 = out.astype(jnp.float32)

    # Loose check vs the exact-f32 reference (kernel uses bf16 operands/output).
    ref = _reference_f32(x, weight, bias, gamma, beta, running_mean, running_var,
                         stride=STRIDE, padding=PAD, eps=EPS)
    assert jnp.allclose(out_f32, ref, rtol=6e-2, atol=6e-2), float(
        jnp.max(jnp.abs(out_f32 - ref)))

    # Tight check vs a reference built from the same bf16-quantized operands
    # (differences are f32 accumulation order + bf16 output rounding only).
    scale = gamma / jnp.sqrt(running_var + EPS)
    shift = beta + scale * (bias - running_mean)
    xq = x.astype(jnp.bfloat16).astype(jnp.float32)
    wq = (weight * scale[:, None, None, None]).astype(jnp.bfloat16).astype(jnp.float32)
    ref_q = lax.conv_general_dilated(
        xq, wq, window_strides=(STRIDE, STRIDE),
        padding=((PAD, PAD), (PAD, PAD)),
        dimension_numbers=("NCHW", "OIHW", "NCHW"),
        precision=lax.Precision.HIGHEST)
    ref_q = jnp.maximum(ref_q + shift[None, :, None, None], 0.0)
    assert jnp.allclose(out_f32, ref_q, rtol=2e-2, atol=2e-2), float(
        jnp.max(jnp.abs(out_f32 - ref_q)))

    print("KERNEL_OK")
</pallas_src>

<mosaic_0001>
module attributes {stable_mosaic.version = 11 : i64} {
  func.func @kernel(%arg0: i32, %arg1: i32, %arg2: i32, %arg3: memref<1x4x342xbf16, #tpu.memory_space<vmem>>, %arg4: memref<8x36xbf16, #tpu.memory_space<vmem>>, %arg5: memref<8x1xf32, #tpu.memory_space<vmem>>, %arg6: memref<1x8x16x16xbf16, #tpu.memory_space<vmem>>) attributes {dimension_semantics = [#tpu.dimension_semantics<parallel>, #tpu.dimension_semantics<parallel>, #tpu.dimension_semantics<parallel>], iteration_bounds = array<i64: 2, 1, 1>, scalar_prefetch = 0 : i64, scratch_operands = 0 : i64, tpu.core_type = #tpu.core_type<tc>, window_params = [{transform_indices = @transform_0, window_bounds = array<i64: 1, 4, 342>}, {transform_indices = @transform_1, window_bounds = array<i64: 8, 36>}, {transform_indices = @transform_2, window_bounds = array<i64: 8, 1>}, {transform_indices = @transform_3, window_bounds = array<i64: 1, 8, 16, 16>}]} {
    %c0 = arith.constant 0 : index
    %c0_0 = arith.constant 0 : index
    %0 = vector.load %arg5[%c0, %c0_0] : memref<8x1xf32, #tpu.memory_space<vmem>>, vector<8x1xf32>
    %1 = vector.shape_cast %0 : vector<8x1xf32> to vector<8x1xf32>
    %2 = vector.broadcast %1 : vector<8x1xf32> to vector<8x288xf32>
    %c0_1 = arith.constant 0 : index
    %c0_2 = arith.constant 0 : index
    %c0_3 = arith.constant 0 : index
    %3 = vector.load %arg3[%c0_1, %c0_2, %c0_3] : memref<1x4x342xbf16, #tpu.memory_space<vmem>>, vector<1x4x290xbf16>
    %4 = vector.shape_cast %3 : vector<1x4x290xbf16> to vector<4x290xbf16>
    %c0_4 = arith.constant 0 : index
    %c0_5 = arith.constant 0 : index
    %5 = vector.load %arg4[%c0_4, %c0_5] : memref<8x36xbf16, #tpu.memory_space<vmem>>, vector<8x4xbf16>
    %6 = vector.extract_strided_slice %4 {offsets = [0, 0], sizes = [4, 288], strides = [1, 1]} : vector<4x290xbf16> to vector<4x288xbf16>
    %cst = arith.constant dense<0.000000e+00> : vector<8x288xf32>
    %7 = tpu.matmul %5, %6, %cst {dimension_numbers = #tpu.dot_dimension_numbers<[1], [0], [0], [1], [0, 0, 1, 1], [], []>} : vector<8x4xbf16>, vector<4x288xbf16>, vector<8x288xf32> -> vector<8x288xf32>
    %8 = arith.addf %2, %7 : vector<8x288xf32>
    %c0_6 = arith.constant 0 : index
    %c4 = arith.constant 4 : index
    %9 = vector.load %arg4[%c0_6, %c4] : memref<8x36xbf16, #tpu.memory_space<vmem>>, vector<8x4xbf16>
    %10 = vector.extract_strided_slice %4 {offsets = [0, 1], sizes = [4, 288], strides = [1, 1]} : vector<4x290xbf16> to vector<4x288xbf16>
    %cst_7 = arith.constant dense<0.000000e+00> : vector<8x288xf32>
    %11 = tpu.matmul %9, %10, %cst_7 {dimension_numbers = #tpu.dot_dimension_numbers<[1], [0], [0], [1], [0, 0, 1, 1], [], []>} : vector<8x4xbf16>, vector<4x288xbf16>, vector<8x288xf32> -> vector<8x288xf32>
    %12 = arith.addf %8, %11 : vector<8x288xf32>
    %c0_8 = arith.constant 0 : index
    %c8 = arith.constant 8 : index
    %13 = vector.load %arg4[%c0_8, %c8] : memref<8x36xbf16, #tpu.memory_space<vmem>>, vector<8x4xbf16>
    %14 = vector.extract_strided_slice %4 {offsets = [0, 2], sizes = [4, 288], strides = [1, 1]} : vector<4x290xbf16> to vector<4x288xbf16>
    %cst_9 = arith.constant dense<0.000000e+00> : vector<8x288xf32>
    %15 = tpu.matmul %13, %14, %cst_9 {dimension_numbers = #tpu.dot_dimension_numbers<[1], [0], [0], [1], [0, 0, 1, 1], [], []>} : vector<8x4xbf16>, vector<4x288xbf16>, vector<8x288xf32> -> vector<8x288xf32>
    %16 = arith.addf %12, %15 : vector<8x288xf32>
    %c0_10 = arith.constant 0 : index
    %c0_11 = arith.constant 0 : index
    %c18 = arith.constant 18 : index
    %17 = vector.load %arg3[%c0_10, %c0_11, %c18] : memref<1x4x342xbf16, #tpu.memory_space<vmem>>, vector<1x4x290xbf16>
    %18 = vector.shape_cast %17 : vector<1x4x290xbf16> to vector<4x290xbf16>
    %c0_12 = arith.constant 0 : index
    %c12 = arith.constant 12 : index
    %19 = vector.load %arg4[%c0_12, %c12] : memref<8x36xbf16, #tpu.memory_space<vmem>>, vector<8x4xbf16>
    %20 = vector.extract_strided_slice %18 {offsets = [0, 0], sizes = [4, 288], strides = [1, 1]} : vector<4x290xbf16> to vector<4x288xbf16>
    %cst_13 = arith.constant dense<0.000000e+00> : vector<8x288xf32>
    %21 = tpu.matmul %19, %20, %cst_13 {dimension_numbers = #tpu.dot_dimension_numbers<[1], [0], [0], [1], [0, 0, 1, 1], [], []>} : vector<8x4xbf16>, vector<4x288xbf16>, vector<8x288xf32> -> vector<8x288xf32>
    %22 = arith.addf %16, %21 : vector<8x288xf32>
    %c0_14 = arith.constant 0 : index
    %c16 = arith.constant 16 : index
    %23 = vector.load %arg4[%c0_14, %c16] : memref<8x36xbf16, #tpu.memory_space<vmem>>, vector<8x4xbf16>
    %24 = vector.extract_strided_slice %18 {offsets = [0, 1], sizes = [4, 288], strides = [1, 1]} : vector<4x290xbf16> to vector<4x288xbf16>
    %cst_15 = arith.constant dense<0.000000e+00> : vector<8x288xf32>
    %25 = tpu.matmul %23, %24, %cst_15 {dimension_numbers = #tpu.dot_dimension_numbers<[1], [0], [0], [1], [0, 0, 1, 1], [], []>} : vector<8x4xbf16>, vector<4x288xbf16>, vector<8x288xf32> -> vector<8x288xf32>
    %26 = arith.addf %22, %25 : vector<8x288xf32>
    %c0_16 = arith.constant 0 : index
    %c20 = arith.constant 20 : index
    %27 = vector.load %arg4[%c0_16, %c20] : memref<8x36xbf16, #tpu.memory_space<vmem>>, vector<8x4xbf16>
    %28 = vector.extract_strided_slice %18 {offsets = [0, 2], sizes = [4, 288], strides = [1, 1]} : vector<4x290xbf16> to vector<4x288xbf16>
    %cst_17 = arith.constant dense<0.000000e+00> : vector<8x288xf32>
    %29 = tpu.matmul %27, %28, %cst_17 {dimension_numbers = #tpu.dot_dimension_numbers<[1], [0], [0], [1], [0, 0, 1, 1], [], []>} : vector<8x4xbf16>, vector<4x288xbf16>, vector<8x288xf32> -> vector<8x288xf32>
    %30 = arith.addf %26, %29 : vector<8x288xf32>
    %c0_18 = arith.constant 0 : index
    %c0_19 = arith.constant 0 : index
    %c36 = arith.constant 36 : index
    %31 = vector.load %arg3[%c0_18, %c0_19, %c36] : memref<1x4x342xbf16, #tpu.memory_space<vmem>>, vector<1x4x290xbf16>
    %32 = vector.shape_cast %31 : vector<1x4x290xbf16> to vector<4x290xbf16>
    %c0_20 = arith.constant 0 : index
    %c24 = arith.constant 24 : index
    %33 = vector.load %arg4[%c0_20, %c24] : memref<8x36xbf16, #tpu.memory_space<vmem>>, vector<8x4xbf16>
    %34 = vector.extract_strided_slice %32 {offsets = [0, 0], sizes = [4, 288], strides = [1, 1]} : vector<4x290xbf16> to vector<4x288xbf16>
    %cst_21 = arith.constant dense<0.000000e+00> : vector<8x288xf32>
    %35 = tpu.matmul %33, %34, %cst_21 {dimension_numbers = #tpu.dot_dimension_numbers<[1], [0], [0], [1], [0, 0, 1, 1], [], []>} : vector<8x4xbf16>, vector<4x288xbf16>, vector<8x288xf32> -> vector<8x288xf32>
    %36 = arith.addf %30, %35 : vector<8x288xf32>
    %c0_22 = arith.constant 0 : index
    %c28 = arith.constant 28 : index
    %37 = vector.load %arg4[%c0_22, %c28] : memref<8x36xbf16, #tpu.memory_space<vmem>>, vector<8x4xbf16>
    %38 = vector.extract_strided_slice %32 {offsets = [0, 1], sizes = [4, 288], strides = [1, 1]} : vector<4x290xbf16> to vector<4x288xbf16>
    %cst_23 = arith.constant dense<0.000000e+00> : vector<8x288xf32>
    %39 = tpu.matmul %37, %38, %cst_23 {dimension_numbers = #tpu.dot_dimension_numbers<[1], [0], [0], [1], [0, 0, 1, 1], [], []>} : vector<8x4xbf16>, vector<4x288xbf16>, vector<8x288xf32> -> vector<8x288xf32>
    %40 = arith.addf %36, %39 : vector<8x288xf32>
    %c0_24 = arith.constant 0 : index
    %c32 = arith.constant 32 : index
    %41 = vector.load %arg4[%c0_24, %c32] : memref<8x36xbf16, #tpu.memory_space<vmem>>, vector<8x4xbf16>
    %42 = vector.extract_strided_slice %32 {offsets = [0, 2], sizes = [4, 288], strides = [1, 1]} : vector<4x290xbf16> to vector<4x288xbf16>
    %cst_25 = arith.constant dense<0.000000e+00> : vector<8x288xf32>
    %43 = tpu.matmul %41, %42, %cst_25 {dimension_numbers = #tpu.dot_dimension_numbers<[1], [0], [0], [1], [0, 0, 1, 1], [], []>} : vector<8x4xbf16>, vector<4x288xbf16>, vector<8x288xf32> -> vector<8x288xf32>
    %44 = arith.addf %40, %43 : vector<8x288xf32>
    %cst_26 = arith.constant 0.000000e+00 : f32
    %45 = vector.broadcast %cst_26 : f32 to vector<8x288xf32>
    %46 = arith.maximumf %44, %45 : vector<8x288xf32>
    %47 = arith.truncf %46 : vector<8x288xf32> to vector<8x288xbf16>
    %48 = vector.extract_strided_slice %47 {offsets = [0, 0], sizes = [8, 16], strides = [1, 1]} : vector<8x288xbf16> to vector<8x16xbf16>
    %c0_27 = arith.constant 0 : index
    %c0_28 = arith.constant 0 : index
    %c0_29 = arith.constant 0 : index
    %c0_30 = arith.constant 0 : index
    %49 = vector.load %arg6[%c0_27, %c0_28, %c0_29, %c0_30] : memref<1x8x16x16xbf16, #tpu.memory_space<vmem>>, vector<1x8x1x16xbf16>
    %50 = vector.shape_cast %49 : vector<1x8x1x16xbf16> to vector<8x16xbf16>
    %51 = vector.shape_cast %48 : vector<8x16xbf16> to vector<1x8x1x16xbf16>
    tpu.vector_store %arg6[%c0_27, %c0_28, %c0_29, %c0_30], %51 {strides = array<i32>} : memref<1x8x16x16xbf16, #tpu.memory_space<vmem>>, vector<1x8x1x16xbf16>,
    %52 = vector.extract_strided_slice %47 {offsets = [0, 18], sizes = [8, 16], strides = [1, 1]} : vector<8x288xbf16> to vector<8x16xbf16>
    %c0_31 = arith.constant 0 : index
    %c0_32 = arith.constant 0 : index
    %c1 = arith.constant 1 : index
    %c0_33 = arith.constant 0 : index
    %53 = vector.load %arg6[%c0_31, %c0_32, %c1, %c0_33] : memref<1x8x16x16xbf16, #tpu.memory_space<vmem>>, vector<1x8x1x16xbf16>
    %54 = vector.shape_cast %53 : vector<1x8x1x16xbf16> to vector<8x16xbf16>
    %55 = vector.shape_cast %52 : vector<8x16xbf16> to vector<1x8x1x16xbf16>
    tpu.vector_store %arg6[%c0_31, %c0_32, %c1, %c0_33], %55 {strides = array<i32>} : memref<1x8x16x16xbf16, #tpu.memory_space<vmem>>, vector<1x8x1x16xbf16>,
    %56 = vector.extract_strided_slice %47 {offsets = [0, 36], sizes = [8, 16], strides = [1, 1]} : vector<8x288xbf16> to vector<8x16xbf16>
    %c0_34 = arith.constant 0 : index
    %c0_35 = arith.constant 0 : index
    %c2 = arith.constant 2 : index
    %c0_36 = arith.constant 0 : index
    %57 = vector.load %arg6[%c0_34, %c0_35, %c2, %c0_36] : memref<1x8x16x16xbf16, #tpu.memory_space<vmem>>, vector<1x8x1x16xbf16>
    %58 = vector.shape_cast %57 : vector<1x8x1x16xbf16> to vector<8x16xbf16>
    %59 = vector.shape_cast %56 : vector<8x16xbf16> to vector<1x8x1x16xbf16>
    tpu.vector_store %arg6[%c0_34, %c0_35, %c2, %c0_36], %59 {strides = array<i32>} : memref<1x8x16x16xbf16, #tpu.memory_space<vmem>>, vector<1x8x1x16xbf16>,
    %60 = vector.extract_strided_slice %47 {offsets = [0, 54], sizes = [8, 16], strides = [1, 1]} : vector<8x288xbf16> to vector<8x16xbf16>
    %c0_37 = arith.constant 0 : index
    %c0_38 = arith.constant 0 : index
    %c3 = arith.constant 3 : index
    %c0_39 = arith.constant 0 : index
    %61 = vector.load %arg6[%c0_37, %c0_38, %c3, %c0_39] : memref<1x8x16x16xbf16, #tpu.memory_space<vmem>>, vector<1x8x1x16xbf16>
    %62 = vector.shape_cast %61 : vector<1x8x1x16xbf16> to vector<8x16xbf16>
    %63 = vector.shape_cast %60 : vector<8x16xbf16> to vector<1x8x1x16xbf16>
    tpu.vector_store %arg6[%c0_37, %c0_38, %c3, %c0_39], %63 {strides = array<i32>} : memref<1x8x16x16xbf16, #tpu.memory_space<vmem>>, vector<1x8x1x16xbf16>,
    %64 = vector.extract_strided_slice %47 {offsets = [0, 72], sizes = [8, 16], strides = [1, 1]} : vector<8x288xbf16> to vector<8x16xbf16>
    %c0_40 = arith.constant 0 : index
    %c0_41 = arith.constant 0 : index
    %c4_42 = arith.constant 4 : index
    %c0_43 = arith.constant 0 : index
    %65 = vector.load %arg6[%c0_40, %c0_41, %c4_42, %c0_43] : memref<1x8x16x16xbf16, #tpu.memory_space<vmem>>, vector<1x8x1x16xbf16>
    %66 = vector.shape_cast %65 : vector<1x8x1x16xbf16> to vector<8x16xbf16>
    %67 = vector.shape_cast %64 : vector<8x16xbf16> to vector<1x8x1x16xbf16>
    tpu.vector_store %arg6[%c0_40, %c0_41, %c4_42, %c0_43], %67 {strides = array<i32>} : memref<1x8x16x16xbf16, #tpu.memory_space<vmem>>, vector<1x8x1x16xbf16>,
    %68 = vector.extract_strided_slice %47 {offsets = [0, 90], sizes = [8, 16], strides = [1, 1]} : vector<8x288xbf16> to vector<8x16xbf16>
    %c0_44 = arith.constant 0 : index
    %c0_45 = arith.constant 0 : index
    %c5 = arith.constant 5 : index
    %c0_46 = arith.constant 0 : index
    %69 = vector.load %arg6[%c0_44, %c0_45, %c5, %c0_46] : memref<1x8x16x16xbf16, #tpu.memory_space<vmem>>, vector<1x8x1x16xbf16>
    %70 = vector.shape_cast %69 : vector<1x8x1x16xbf16> to vector<8x16xbf16>
    %71 = vector.shape_cast %68 : vector<8x16xbf16> to vector<1x8x1x16xbf16>
    tpu.vector_store %arg6[%c0_44, %c0_45, %c5, %c0_46], %71 {strides = array<i32>} : memref<1x8x16x16xbf16, #tpu.memory_space<vmem>>, vector<1x8x1x16xbf16>,
    %72 = vector.extract_strided_slice %47 {offsets = [0, 108], sizes = [8, 16], strides = [1, 1]} : vector<8x288xbf16> to vector<8x16xbf16>
    %c0_47 = arith.constant 0 : index
    %c0_48 = arith.constant 0 : index
    %c6 = arith.constant 6 : index
    %c0_49 = arith.constant 0 : index
    %73 = vector.load %arg6[%c0_47, %c0_48, %c6, %c0_49] : memref<1x8x16x16xbf16, #tpu.memory_space<vmem>>, vector<1x8x1x16xbf16>
    %74 = vector.shape_cast %73 : vector<1x8x1x16xbf16> to vector<8x16xbf16>
    %75 = vector.shape_cast %72 : vector<8x16xbf16> to vector<1x8x1x16xbf16>
    tpu.vector_store %arg6[%c0_47, %c0_48, %c6, %c0_49], %75 {strides = array<i32>} : memref<1x8x16x16xbf16, #tpu.memory_space<vmem>>, vector<1x8x1x16xbf16>,
    %76 = vector.extract_strided_slice %47 {offsets = [0, 126], sizes = [8, 16], strides = [1, 1]} : vector<8x288xbf16> to vector<8x16xbf16>
    %c0_50 = arith.constant 0 : index
    %c0_51 = arith.constant 0 : index
    %c7 = arith.constant 7 : index
    %c0_52 = arith.constant 0 : index
    %77 = vector.load %arg6[%c0_50, %c0_51, %c7, %c0_52] : memref<1x8x16x16xbf16, #tpu.memory_space<vmem>>, vector<1x8x1x16xbf16>
    %78 = vector.shape_cast %77 : vector<1x8x1x16xbf16> to vector<8x16xbf16>
    %79 = vector.shape_cast %76 : vector<8x16xbf16> to vector<1x8x1x16xbf16>
    tpu.vector_store %arg6[%c0_50, %c0_51, %c7, %c0_52], %79 {strides = array<i32>} : memref<1x8x16x16xbf16, #tpu.memory_space<vmem>>, vector<1x8x1x16xbf16>,
    %80 = vector.extract_strided_slice %47 {offsets = [0, 144], sizes = [8, 16], strides = [1, 1]} : vector<8x288xbf16> to vector<8x16xbf16>
    %c0_53 = arith.constant 0 : index
    %c0_54 = arith.constant 0 : index
    %c8_55 = arith.constant 8 : index
    %c0_56 = arith.constant 0 : index
    %81 = vector.load %arg6[%c0_53, %c0_54, %c8_55, %c0_56] : memref<1x8x16x16xbf16, #tpu.memory_space<vmem>>, vector<1x8x1x16xbf16>
    %82 = vector.shape_cast %81 : vector<1x8x1x16xbf16> to vector<8x16xbf16>
    %83 = vector.shape_cast %80 : vector<8x16xbf16> to vector<1x8x1x16xbf16>
    tpu.vector_store %arg6[%c0_53, %c0_54, %c8_55, %c0_56], %83 {strides = array<i32>} : memref<1x8x16x16xbf16, #tpu.memory_space<vmem>>, vector<1x8x1x16xbf16>,
    %84 = vector.extract_strided_slice %47 {offsets = [0, 162], sizes = [8, 16], strides = [1, 1]} : vector<8x288xbf16> to vector<8x16xbf16>
    %c0_57 = arith.constant 0 : index
    %c0_58 = arith.constant 0 : index
    %c9 = arith.constant 9 : index
    %c0_59 = arith.constant 0 : index
    %85 = vector.load %arg6[%c0_57, %c0_58, %c9, %c0_59] : memref<1x8x16x16xbf16, #tpu.memory_space<vmem>>, vector<1x8x1x16xbf16>
    %86 = vector.shape_cast %85 : vector<1x8x1x16xbf16> to vector<8x16xbf16>
    %87 = vector.shape_cast %84 : vector<8x16xbf16> to vector<1x8x1x16xbf16>
    tpu.vector_store %arg6[%c0_57, %c0_58, %c9, %c0_59], %87 {strides = array<i32>} : memref<1x8x16x16xbf16, #tpu.memory_space<vmem>>, vector<1x8x1x16xbf16>,
    %88 = vector.extract_strided_slice %47 {offsets = [0, 180], sizes = [8, 16], strides = [1, 1]} : vector<8x288xbf16> to vector<8x16xbf16>
    %c0_60 = arith.constant 0 : index
    %c0_61 = arith.constant 0 : index
    %c10 = arith.constant 10 : index
    %c0_62 = arith.constant 0 : index
    %89 = vector.load %arg6[%c0_60, %c0_61, %c10, %c0_62] : memref<1x8x16x16xbf16, #tpu.memory_space<vmem>>, vector<1x8x1x16xbf16>
    %90 = vector.shape_cast %89 : vector<1x8x1x16xbf16> to vector<8x16xbf16>
    %91 = vector.shape_cast %88 : vector<8x16xbf16> to vector<1x8x1x16xbf16>
    tpu.vector_store %arg6[%c0_60, %c0_61, %c10, %c0_62], %91 {strides = array<i32>} : memref<1x8x16x16xbf16, #tpu.memory_space<vmem>>, vector<1x8x1x16xbf16>,
    %92 = vector.extract_strided_slice %47 {offsets = [0, 198], sizes = [8, 16], strides = [1, 1]} : vector<8x288xbf16> to vector<8x16xbf16>
    %c0_63 = arith.constant 0 : index
    %c0_64 = arith.constant 0 : index
    %c11 = arith.constant 11 : index
    %c0_65 = arith.constant 0 : index
    %93 = vector.load %arg6[%c0_63, %c0_64, %c11, %c0_65] : memref<1x8x16x16xbf16, #tpu.memory_space<vmem>>, vector<1x8x1x16xbf16>
    %94 = vector.shape_cast %93 : vector<1x8x1x16xbf16> to vector<8x16xbf16>
    %95 = vector.shape_cast %92 : vector<8x16xbf16> to vector<1x8x1x16xbf16>
    tpu.vector_store %arg6[%c0_63, %c0_64, %c11, %c0_65], %95 {strides = array<i32>} : memref<1x8x16x16xbf16, #tpu.memory_space<vmem>>, vector<1x8x1x16xbf16>,
    %96 = vector.extract_strided_slice %47 {offsets = [0, 216], sizes = [8, 16], strides = [1, 1]} : vector<8x288xbf16> to vector<8x16xbf16>
    %c0_66 = arith.constant 0 : index
    %c0_67 = arith.constant 0 : index
    %c12_68 = arith.constant 12 : index
    %c0_69 = arith.constant 0 : index
    %97 = vector.load %arg6[%c0_66, %c0_67, %c12_68, %c0_69] : memref<1x8x16x16xbf16, #tpu.memory_space<vmem>>, vector<1x8x1x16xbf16>
    %98 = vector.shape_cast %97 : vector<1x8x1x16xbf16> to vector<8x16xbf16>
    %99 = vector.shape_cast %96 : vector<8x16xbf16> to vector<1x8x1x16xbf16>
    tpu.vector_store %arg6[%c0_66, %c0_67, %c12_68, %c0_69], %99 {strides = array<i32>} : memref<1x8x16x16xbf16, #tpu.memory_space<vmem>>, vector<1x8x1x16xbf16>,
    %100 = vector.extract_strided_slice %47 {offsets = [0, 234], sizes = [8, 16], strides = [1, 1]} : vector<8x288xbf16> to vector<8x16xbf16>
    %c0_70 = arith.constant 0 : index
    %c0_71 = arith.constant 0 : index
    %c13 = arith.constant 13 : index
    %c0_72 = arith.constant 0 : index
    %101 = vector.load %arg6[%c0_70, %c0_71, %c13, %c0_72] : memref<1x8x16x16xbf16, #tpu.memory_space<vmem>>, vector<1x8x1x16xbf16>
    %102 = vector.shape_cast %101 : vector<1x8x1x16xbf16> to vector<8x16xbf16>
    %103 = vector.shape_cast %100 : vector<8x16xbf16> to vector<1x8x1x16xbf16>
    tpu.vector_store %arg6[%c0_70, %c0_71, %c13, %c0_72], %103 {strides = array<i32>} : memref<1x8x16x16xbf16, #tpu.memory_space<vmem>>, vector<1x8x1x16xbf16>,
    %104 = vector.extract_strided_slice %47 {offsets = [0, 252], sizes = [8, 16], strides = [1, 1]} : vector<8x288xbf16> to vector<8x16xbf16>
    %c0_73 = arith.constant 0 : index
    %c0_74 = arith.constant 0 : index
    %c14 = arith.constant 14 : index
    %c0_75 = arith.constant 0 : index
    %105 = vector.load %arg6[%c0_73, %c0_74, %c14, %c0_75] : memref<1x8x16x16xbf16, #tpu.memory_space<vmem>>, vector<1x8x1x16xbf16>
    %106 = vector.shape_cast %105 : vector<1x8x1x16xbf16> to vector<8x16xbf16>
    %107 = vector.shape_cast %104 : vector<8x16xbf16> to vector<1x8x1x16xbf16>
    tpu.vector_store %arg6[%c0_73, %c0_74, %c14, %c0_75], %107 {strides = array<i32>} : memref<1x8x16x16xbf16, #tpu.memory_space<vmem>>, vector<1x8x1x16xbf16>,
    %108 = vector.extract_strided_slice %47 {offsets = [0, 270], sizes = [8, 16], strides = [1, 1]} : vector<8x288xbf16> to vector<8x16xbf16>
    %c0_76 = arith.constant 0 : index
    %c0_77 = arith.constant 0 : index
    %c15 = arith.constant 15 : index
    %c0_78 = arith.constant 0 : index
    %109 = vector.load %arg6[%c0_76, %c0_77, %c15, %c0_78] : memref<1x8x16x16xbf16, #tpu.memory_space<vmem>>, vector<1x8x1x16xbf16>
    %110 = vector.shape_cast %109 : vector<1x8x1x16xbf16> to vector<8x16xbf16>
    %111 = vector.shape_cast %108 : vector<8x16xbf16> to vector<1x8x1x16xbf16>
    tpu.vector_store %arg6[%c0_76, %c0_77, %c15, %c0_78], %111 {strides = array<i32>} : memref<1x8x16x16xbf16, #tpu.memory_space<vmem>>, vector<1x8x1x16xbf16>,
    return
  }
  func.func @transform_0(%arg0: i32, %arg1: i32, %arg2: i32) -> (i32, i32, i32) {
    %c0_i32 = arith.constant 0 : i32
    %c0_i32_0 = arith.constant 0 : i32
    %c0_i32_1 = arith.constant 0 : i32
    return %arg0, %c0_i32, %c0_i32_0 : i32, i32, i32
  }
  func.func @transform_1(%arg0: i32, %arg1: i32, %arg2: i32) -> (i32, i32) {
    %c0_i32 = arith.constant 0 : i32
    %c0_i32_0 = arith.constant 0 : i32
    return %arg1, %c0_i32 : i32, i32
  }
  func.func @transform_2(%arg0: i32, %arg1: i32, %arg2: i32) -> (i32, i32) {
    %c0_i32 = arith.constant 0 : i32
    %c0_i32_0 = arith.constant 0 : i32
    return %arg1, %c0_i32 : i32, i32
  }
  func.func @transform_3(%arg0: i32, %arg1: i32, %arg2: i32) -> (i32, i32, i32, i32) {
    %c0_i32 = arith.constant 0 : i32
    %c0_i32_0 = arith.constant 0 : i32
    return %arg0, %arg1, %arg2, %c0_i32 : i32, i32, i32, i32
  }
}

</mosaic_0001>

<llo_original>
// kernel: tpu_custom_call.1
$region0: #{tpu_custom_call.1}
  #allocation0 [shape = 'u32[]', space=smem, size = 0x4, offset = 0x4, fixed_abs, tag = 'smem constant byte address 0x4 - core index']
  #allocation1 [shape = 'u32[144,128]{1,0:T(1,128)}', space=vmem, size = 0x12000, scoped, tag = 'internal scratch']
  %s0 = inlined_call_operand.hbm [shape: bf16[2,4,342], index: 0, kind: input, shape index: {}]
  %s1 = inlined_call_operand.vmem [shape: bf16[8,36], index: 1, kind: input, shape index: {}]
  %s2 = inlined_call_operand.vmem [shape: f32[8,1], index: 2, kind: input, shape index: {}]
  %s3 = inlined_call_operand.hbm [shape: bf16[2,8,16,16], index: 3, kind: output, shape index: {}]
  %s4 = sld [smem:[#allocation0]]
  $region49: #{tpu_custom_call.1} parent=0
    _
  %s6 = ssub.s32 1, %s4
  %s7 = scalar_select 0, %s6, %s4
  $region1: #{tpu_custom_call.1} parent=0
    #allocation2 [shape = 'u8[6144]{0}', space=vmem, size = 0x1800, scoped, tag = 'input window, operand 0']
    #allocation3 [shape = 's32[2]{0}', space=sflag, size = 0x8, scoped, tag = 'scoped memory for tpu_custom_call.1']
    #allocation4 [shape = 's32[2]{0}', space=sflag, size = 0x8, scoped, tag = 'scoped memory for tpu_custom_call.1']
    #allocation5 [shape = 'u8[65536]{0}', space=vmem, size = 0x10000, scoped, tag = 'output window, operand 0']
    %8 = vsyncpa [#allocation3], 0
    %s9 = scalar_lea.sflag [#allocation3], 1
    %10 = vsyncpa %s9, 0
    %11 = vsyncpa [#allocation4], 0
    %s12 = scalar_lea.sflag [#allocation4], 1
    %13 = vsyncpa %s12, 0
    loop: start=0, step=1, limit=4
    $region2: #{tpu_custom_call.1} parent=1 // loop_pre_header
      _
    $region3: #{tpu_custom_call.1} parent=1 // loop_header
      %s15 = sphi 0, %s19
      %p16 = scmp.ge.s32.totalorder %s15, 4
      %s22 = sphi 0, %s41
      %s23 = sphi 0, %s37
      %s24 = sphi 0, %s33
      %s25 = sphi 0, %s22
      %s26 = sphi 0, %s23
      %s27 = sphi 0, %s24
      %s28 = sphi 0, %s25
      %s29 = sphi 0, %s26
      %s30 = sphi 0, %s27
      %s44 = sphi 0, %s46
      %s47 = sphi 0, %s44
      %s48 = sphi 0, %s47
      %s64 = sphi 0, %s48
      %s70 = sphi 0, %s72
      %s73 = sphi 0, %s70
      %s74 = sphi 0, %s73
      %s90 = sphi 0, %s74
      %s96 = sphi 0, %s98
      %s99 = sphi 0, %s96
      %s100 = sphi 0, %s99
      %s116 = sphi 0, %s100
      %s126 = sphi 0, %s128
      %s129 = sphi 0, %s126
      %s130 = sphi 0, %s129
      %s146 = sphi 0, %s130
    $region4: #{tpu_custom_call.1} parent=1 // loop_header_branch
      %18 = sbr.rel (%p16) target = $region8
    $region5: #{tpu_custom_call.1} parent=1 // loop_body
      %s20 = ssub.s32 %s15, 1
      %s21 = ssub.s32 %s15, 2
      %s31 = sadd.s32 1, %s24
      %p32 = scmp.ge.s32.totalorder %s31, 1
      %s33 = scalar_select %p32, 0, %s31
      %s34 = sadd.s32 1, %s23
      %s35 = scalar_select %p32, %s34, %s23
      %p36 = scmp.ge.s32.totalorder %s35, 1
      %s37 = scalar_select %p36, 0, %s35
      %s38 = sadd.s32 1, %s22
      %s39 = scalar_select %p36, %s38, %s22
      %p40 = scmp.ge.s32.totalorder %s39, 2
      %s41 = scalar_select %p40, 0, %s39
      %s42 = ssub.s32 %s22, %s41
      %p43 = scmp.eq.s32.totalorder %s42, 0
      %s45 = sadd.s32 %s44, 1
      %s46 = scalar_select %p43, %s44, %s45
      %p49 = pneg %p43
      %p50 = scmp.eq.s32.totalorder %s15, 1
      %p51 = por %p49, %p50
      %p52 = scmp.ne.s32.totalorder %s44, %s47
      %p53 = scmp.eq.s32.totalorder %s15, 0
      %p54 = por %p52, %p53
      %p55 = scmp.ne.s32.totalorder %s44, %s47
      %p56 = scmp.eq.s32.totalorder %s20, 1
      %p57 = por %p55, %p56
      %p58 = scmp.ne.s32.totalorder %s47, %s48
      %p59 = scmp.eq.s32.totalorder %s20, 0
      %p60 = por %p58, %p59
      %p61 = scmp.ne.s32.totalorder %s47, %s48
      %p62 = scmp.eq.s32.totalorder %s21, 1
      %p63 = por %p61, %p62
      %p65 = scmp.ne.s32.totalorder %s48, %s64
      %p66 = scmp.eq.s32.totalorder %s21, 0
      %p67 = por %p65, %p66
      %s68 = ssub.s32 %s23, %s37
      %p69 = scmp.eq.s32.totalorder %s68, 0
      %s71 = sadd.s32 %s70, 1
      %s72 = scalar_select %p69, %s70, %s71
      %p75 = pneg %p69
      %p76 = scmp.eq.s32.totalorder %s15, 1
      %p77 = por %p75, %p76
      %p78 = scmp.ne.s32.totalorder %s70, %s73
      %p79 = scmp.eq.s32.totalorder %s15, 0
      %p80 = por %p78, %p79
      %p81 = scmp.ne.s32.totalorder %s70, %s73
      %p82 = scmp.eq.s32.totalorder %s20, 1
      %p83 = por %p81, %p82
      %p84 = scmp.ne.s32.totalorder %s73, %s74
      %p85 = scmp.eq.s32.totalorder %s20, 0
      %p86 = por %p84, %p85
      %p87 = scmp.ne.s32.totalorder %s73, %s74
      %p88 = scmp.eq.s32.totalorder %s21, 1
      %p89 = por %p87, %p88
      %p91 = scmp.ne.s32.totalorder %s74, %s90
      %p92 = scmp.eq.s32.totalorder %s21, 0
      %p93 = por %p91, %p92
      %s94 = ssub.s32 %s23, %s37
      %p95 = scmp.eq.s32.totalorder %s94, 0
      %s97 = sadd.s32 %s96, 1
      %s98 = scalar_select %p95, %s96, %s97
      %p101 = pneg %p95
      %p102 = scmp.eq.s32.totalorder %s15, 1
      %p103 = por %p101, %p102
      %p104 = scmp.ne.s32.totalorder %s96, %s99
      %p105 = scmp.eq.s32.totalorder %s15, 0
      %p106 = por %p104, %p105
      %p107 = scmp.ne.s32.totalorder %s96, %s99
      %p108 = scmp.eq.s32.totalorder %s20, 1
      %p109 = por %p107, %p108
      %p110 = scmp.ne.s32.totalorder %s99, %s100
      %p111 = scmp.eq.s32.totalorder %s20, 0
      %p112 = por %p110, %p111
      %p113 = scmp.ne.s32.totalorder %s99, %s100
      %p114 = scmp.eq.s32.totalorder %s21, 1
      %p115 = por %p113, %p114
      %p117 = scmp.ne.s32.totalorder %s100, %s116
      %p118 = scmp.eq.s32.totalorder %s21, 0
      %p119 = por %p117, %p118
      %s120 = ssub.s32 %s22, %s41
      %s121 = ssub.s32 %s23, %s37
      %s122 = sor.u32 %s120, %s121
      %s123 = ssub.s32 %s24, %s33
      %s124 = sor.u32 %s122, %s123
      %p125 = scmp.eq.s32.totalorder %s124, 0
      %s127 = sadd.s32 %s126, 1
      %s128 = scalar_select %p125, %s126, %s127
      %p131 = pneg %p125
      %p132 = scmp.eq.s32.totalorder %s15, 1
      %p133 = por %p131, %p132
      %p134 = scmp.ne.s32.totalorder %s126, %s129
      %p135 = scmp.eq.s32.totalorder %s15, 0
      %p136 = por %p134, %p135
      %p137 = scmp.ne.s32.totalorder %s126, %s129
      %p138 = scmp.eq.s32.totalorder %s20, 1
      %p139 = por %p137, %p138
      %p140 = scmp.ne.s32.totalorder %s129, %s130
      %p141 = scmp.eq.s32.totalorder %s20, 0
      %p142 = por %p140, %p141
      %p143 = scmp.ne.s32.totalorder %s129, %s130
      %p144 = scmp.eq.s32.totalorder %s21, 1
      %p145 = por %p143, %p144
      %p147 = scmp.ne.s32.totalorder %s130, %s146
      %p148 = scmp.eq.s32.totalorder %s21, 0
      %p149 = por %p147, %p148
      %p150 = scmp.le.s32.totalorder 1, %s15
      %p151 = scmp.lt.s32.totalorder %s15, 3
      %p152 = pnand %p150, %p151
      %p153 = pneg %p152
      // Predicated region
      $region9: #{tpu_custom_call.1} parent=5 // pred_check
        _
      $region10: #{tpu_custom_call.1} parent=5 // pred_check_branch
        %155 = sbr.rel (%p152) target = $region12
      $region11: #{tpu_custom_call.1} parent=5 // pred_region
        %s156 = ssub.s32 %s15, 1
        // Predicated region
        $region13: #{tpu_custom_call.1} parent=11 // pred_check
          %p157 = pneg %p86
        $region14: #{tpu_custom_call.1} parent=11 // pred_check_branch
          %159 = sbr.rel (%p157) target = $region16
        $region15: #{tpu_custom_call.1} parent=11 // pred_region
          %p160 = scmp.lt.s32.totalorder %s26, 0
          %s161 = scalar_select %p160, %s26, 0
          %s162 = smul.addr %s161, 4
          %s163 = scalar_lea.vmem %s1, %s162
        $region16: #{tpu_custom_call.1} parent=11 // pred_fallthru
          _
        // Predicated region
        $region17: #{tpu_custom_call.1} parent=11 // pred_check
          %p164 = pneg %p112
        $region18: #{tpu_custom_call.1} parent=11 // pred_check_branch
          %166 = sbr.rel (%p164) target = $region20
        $region19: #{tpu_custom_call.1} parent=11 // pred_region
          %p167 = scmp.lt.s32.totalorder %s26, 0
          %s168 = scalar_select %p167, %s26, 0
          %s169 = smul.addr %s168, 8
          %s170 = scalar_lea.vmem %s2, %s169
        $region20: #{tpu_custom_call.1} parent=11 // pred_fallthru
          _
      $region12: #{tpu_custom_call.1} parent=5 // pred_fallthru
        _
      %p171 = scmp.lt.s32.totalorder %s15, 2
      // Predicated region
      $region21: #{tpu_custom_call.1} parent=5 // pred_check
        %p172 = pneg %p171
      $region22: #{tpu_custom_call.1} parent=5 // pred_check_branch
        %174 = sbr.rel (%p172) target = $region24
      $region23: #{tpu_custom_call.1} parent=5 // pred_region
        // Predicated region
        $region25: #{tpu_custom_call.1} parent=23 // pred_check
          %p175 = pneg %p54
        $region26: #{tpu_custom_call.1} parent=23 // pred_check_branch
          %177 = sbr.rel (%p175) target = $region28
        $region27: #{tpu_custom_call.1} parent=23 // pred_region
          %s178 = sand.u32 %s44, 1
          %s179 = scalar_lea.sflag [#allocation3], %s178
          %s180 = sand.u32 %s44, 1
          %s181 = smul.addr %s180, 6
          %s182 = scalar_lea.vmem [#allocation2], %s181
          %s184 = ssub.s32 96, 96
          %185 = vsyncadd %s179, %s184
          %s186 = smul.addr %s22, 3
          %s187 = smul.addr %s186, 32
          %s188 = scalar_lea.hbm %s0, %s187
          %s190 = sshll.u32 %s182, 4
          %s191 = int_to_ptr.vmem [resolvable:$true] %s190
          %193 = dma.hbm_to_vmem [thread:$0]  %s188, 96, %s191, %s179
        $region28: #{tpu_custom_call.1} parent=23 // pred_fallthru
          _
      $region24: #{tpu_custom_call.1} parent=5 // pred_fallthru
        _
      %p194 = scmp.le.s32.totalorder 1, %s15
      %p195 = scmp.lt.s32.totalorder %s15, 3
      %p196 = pnand %p194, %p195
      %p197 = pneg %p196
      // Predicated region
      $region29: #{tpu_custom_call.1} parent=5 // pred_check
        _
      $region30: #{tpu_custom_call.1} parent=5 // pred_check_branch
        %199 = sbr.rel (%p196) target = $region32
      $region31: #{tpu_custom_call.1} parent=5 // pred_region
        %s200 = ssub.s32 %s15, 1
        %s201 = sand.u32 %s47, 1
        %s202 = scalar_lea.sflag [#allocation3], %s201
        %s203 = sand.u32 %s47, 1
        %s204 = smul.addr %s203, 6
        %s205 = scalar_lea.vmem [#allocation2], %s204
        // Predicated region
        $region33: #{tpu_custom_call.1} parent=31 // pred_check
          %p206 = pneg %p60
        $region34: #{tpu_custom_call.1} parent=31 // pred_check_branch
          %208 = sbr.rel (%p206) target = $region36
        $region35: #{tpu_custom_call.1} parent=31 // pred_region
          %209 = dma.done %s202, 96
        $region36: #{tpu_custom_call.1} parent=31 // pred_fallthru
          _
        %s210 = sand.u32 %s47, 1
        %s211 = scalar_lea.sflag [#allocation3], %s210
        %s212 = sand.u32 %s47, 1
        %s213 = smul.addr %s212, 6
        %s214 = scalar_lea.vmem [#allocation2], %s213
        %p215 = pneg %p60
        %p216 = pneg %p57
        %p217 = scmp.lt.s32.totalorder %s26, 0
        %s218 = scalar_select %p217, %s26, 0
        %s219 = smul.addr %s218, 4
        %s220 = scalar_lea.vmem %s1, %s219
        %p221 = pneg %p86
        %p222 = pneg %p83
        %p223 = scmp.lt.s32.totalorder %s26, 0
        %s224 = scalar_select %p223, %s26, 0
        %s225 = smul.addr %s224, 8
        %s226 = scalar_lea.vmem %s2, %s225
        %p227 = pneg %p112
        %p228 = pneg %p109
        %p229 = pneg %p142
        %p230 = pneg %p139
        %s231 = sand.u32 %s129, 1
        %s232 = scalar_lea.sflag [#allocation4], %s231
        %s233 = sand.u32 %s129, 1
        %s234 = smul.addr %s233, 64
        %s235 = scalar_lea.vmem [#allocation5], %s234
        %p236 = scmp.lt.s32.totalorder %s26, 0
        %s237 = scalar_select %p236, %s26, 0
        %s238 = smul.addr %s237, 4
        %s239 = scalar_lea.vmem %s1, %s238
        %p240 = scmp.lt.s32.totalorder %s26, 0
        %s241 = scalar_select %p240, %s26, 0
        %s242 = smul.addr %s241, 8
        %s243 = scalar_lea.vmem %s2, %s242
        %s244 = smul.u32 8, %s26
        %s245 = smul.u32 2, %s27
        %v247 = vld [vmem:[%s243] sm:$0xff]
        %249 = vset.pattern.permute.xlu0 0
        %250 = vperm.xlu0 %249, %v247
        %v251 = vpop.permute.xlu0 %250
        %v253 = vld [vmem:[%s205] sm:$0x3f]
        %v254 = vld [vmem:[%s239] sm:$0xf]
        %v256 = vcombine.high %v253, %v253
        %v258 = vunpack.c.l.s4 1983009808
        %v259 = vunpack.c.0.s8 %v258
        %v260 = vlaneseq
        %v261 = vshrl.u32 %v260, 7
        %v262 = vsub.s32 %v259, %v261
        %v263 = vrot.slane %v253, %v262
        %v265 = vunpack.c.l.s4 1983009808
        %v266 = vunpack.c.0.s8 %v265
        %v267 = vlaneseq
        %v268 = vshrl.u32 %v267, 7
        %v269 = vsub.s32 %v266, %v268
        %v270 = vrot.slane %v256, %v269
        %v271 = vcombine.high %v263, %v263
        %vm272 = vcmask 31744
        %v274 = vsel %vm272, %v254, 0
        %vm276 = vcmask 1041408
        %v278 = vsel %vm276, %v263, 0
        %v281 = vsel %vm276, %v271, 0
        %v284 = vsel %vm276, %v270, 0
        %286 = vmatprep.subr.bf16.mxu0 %v281
        %287 = vmatpush1.bf16.msra.mxu0 %v278
        %288 = vmatprep.subr.bf16.mxu0 0
        %289 = vmatpush1.bf16.msra.mxu0 0
        %290 = vmatprep.subr.bf16.mxu0 0
        %291 = vmatpush1.bf16.msra.mxu0 0
        %292 = vmatprep.subr.bf16.mxu0 0
        %293 = vmatpush1.bf16.msra.mxu0 0
        %294 = vmatprep.subr.bf16.mxu0 0
        %295 = vmatpush1.bf16.msra.mxu0 0
        %296 = vmatprep.subr.bf16.mxu0 0
        %297 = vmatpush1.bf16.msra.mxu0 0
        %298 = vmatprep.subr.bf16.mxu0 0
        %299 = vmatpush1.bf16.msra.mxu0 0
        %300 = vmatprep.subr.bf16.mxu0 0
        %301 = vmatpush1.bf16.msra.mxu0 0
        %302 = vmatprep.subr.bf16.mxu0 0
        %303 = vmatpush1.bf16.msra.mxu0 0
        %304 = vmatprep.subr.bf16.mxu0 0
        %305 = vmatpush1.bf16.msra.mxu0 0
        %306 = vmatprep.subr.bf16.mxu0 0
        %307 = vmatpush1.bf16.msra.mxu0 0
        %308 = vmatprep.subr.bf16.mxu0 0
        %309 = vmatpush1.bf16.msra.mxu0 0
        %310 = vmatprep.subr.bf16.mxu0 0
        %311 = vmatpush1.bf16.msra.mxu0 0
        %312 = vmatprep.subr.bf16.mxu0 0
        %313 = vmatpush1.bf16.msra.mxu0 0
        %314 = vmatprep.subr.bf16.mxu0 0
        %315 = vmatpush1.bf16.msra.mxu0 0
        %316 = vmatprep.subr.bf16.mxu0 0
        %317 = vmatpush1.bf16.msra.mxu0 0
        %318 = vmatprep.mubr.bf16.mxu0 0
        %319 = vmatmul.mubr.bf16.gmra.mrb[0].mxu0 %v274
        %v320 = vpop.f32.mrb[0].mxu0
        %v321 = vadd.f32 0.0, %v320
        %v322 = vpop.f32.mrb[0].mxu0
        %v323 = vadd.f32 0.0, %v322
        %v324 = vpop.f32.mrb[0].mxu0
        %v325 = vpop.f32.mrb[0].mxu0
        %326 = vdwg.mxu0
        %327 = vmatprep.subr.bf16.mxu0 0
        %328 = vmatpush1.bf16.msra.mxu0 %v284
        %329 = vmatprep.subr.bf16.mxu0 0
        %330 = vmatpush1.bf16.msra.mxu0 0
        %331 = vmatprep.subr.bf16.mxu0 0
        %332 = vmatpush1.bf16.msra.mxu0 0
        %333 = vmatprep.subr.bf16.mxu0 0
        %334 = vmatpush1.bf16.msra.mxu0 0
        %335 = vmatprep.subr.bf16.mxu0 0
        %336 = vmatpush1.bf16.msra.mxu0 0
        %337 = vmatprep.subr.bf16.mxu0 0
        %338 = vmatpush1.bf16.msra.mxu0 0
        %339 = vmatprep.subr.bf16.mxu0 0
        %340 = vmatpush1.bf16.msra.mxu0 0
        %341 = vmatprep.subr.bf16.mxu0 0
        %342 = vmatpush1.bf16.msra.mxu0 0
        %343 = vmatprep.subr.bf16.mxu0 0
        %344 = vmatpush1.bf16.msra.mxu0 0
        %345 = vmatprep.subr.bf16.mxu0 0
        %346 = vmatpush1.bf16.msra.mxu0 0
        %347 = vmatprep.subr.bf16.mxu0 0
        %348 = vmatpush1.bf16.msra.mxu0 0
        %349 = vmatprep.subr.bf16.mxu0 0
        %350 = vmatpush1.bf16.msra.mxu0 0
        %351 = vmatprep.subr.bf16.mxu0 0
        %352 = vmatpush1.bf16.msra.mxu0 0
        %353 = vmatprep.subr.bf16.mxu0 0
        %354 = vmatpush1.bf16.msra.mxu0 0
        %355 = vmatprep.subr.bf16.mxu0 0
        %356 = vmatpush1.bf16.msra.mxu0 0
        %357 = vmatprep.subr.bf16.mxu0 0
        %358 = vmatpush1.bf16.msra.mxu0 0
        %359 = vmatprep.mubr.bf16.mxu0 0
        %360 = vmatmul.mubr.bf16.gmra.mrb[0].mxu0 %v274
        %v361 = vpop.f32.mrb[0].mxu0
        %v362 = vadd.f32 0.0, %v361
        %v363 = vpop.f32.mrb[0].mxu0
        %v364 = vpop.f32.mrb[0].mxu0
        %v365 = vpop.f32.mrb[0].mxu0
        %366 = vdwg.mxu0
        %v367 = vadd.f32 %v251, %v321
        %v368 = vadd.f32 %v251, %v323
        %v369 = vadd.f32 %v251, %v362
        %v370 = vld [vmem:[%s239] sm:$0xf]
        %v372 = vunpack.c.l.b16 %v370
        %v373 = vpack.c.b16 %v372, %v372
        %374 = vrot.lane.b32.xlu0 %v373, 124
        %v375 = vpop.permute.xlu0 %374
        %376 = vrot.lane.b32.xlu0 %v263, 127
        %v377 = vpop.permute.xlu0 %376
        %378 = vrot.lane.b32.xlu0 %v271, 127
        %v379 = vpop.permute.xlu0 %378
        %380 = vrot.lane.b32.xlu0 %v270, 127
        %v381 = vpop.permute.xlu0 %380
        %vm382 = vcmask 1039360
        %v383 = vsel %vm382, %v377, %v379
        %v384 = vsel %vm382, %v379, %v381
        %v386 = vsel %vm272, %v375, 0
        %v389 = vsel %vm276, %v383, 0
        %v392 = vsel %vm276, %v384, 0
        %v395 = vsel %vm276, %v381, 0
        %397 = vmatprep.subr.bf16.mxu0 %v392
        %398 = vmatpush1.bf16.msra.mxu0 %v389
        %399 = vmatprep.subr.bf16.mxu0 0
        %400 = vmatpush1.bf16.msra.mxu0 0
        %401 = vmatprep.subr.bf16.mxu0 0
        %402 = vmatpush1.bf16.msra.mxu0 0
        %403 = vmatprep.subr.bf16.mxu0 0
        %404 = vmatpush1.bf16.msra.mxu0 0
        %405 = vmatprep.subr.bf16.mxu0 0
        %406 = vmatpush1.bf16.msra.mxu0 0
        %407 = vmatprep.subr.bf16.mxu0 0
        %408 = vmatpush1.bf16.msra.mxu0 0
        %409 = vmatprep.subr.bf16.mxu0 0
        %410 = vmatpush1.bf16.msra.mxu0 0
        %411 = vmatprep.subr.bf16.mxu0 0
        %412 = vmatpush1.bf16.msra.mxu0 0
        %413 = vmatprep.subr.bf16.mxu0 0
        %414 = vmatpush1.bf16.msra.mxu0 0
        %415 = vmatprep.subr.bf16.mxu0 0
        %416 = vmatpush1.bf16.msra.mxu0 0
        %417 = vmatprep.subr.bf16.mxu0 0
        %418 = vmatpush1.bf16.msra.mxu0 0
        %419 = vmatprep.subr.bf16.mxu0 0
        %420 = vmatpush1.bf16.msra.mxu0 0
        %421 = vmatprep.subr.bf16.mxu0 0
        %422 = vmatpush1.bf16.msra.mxu0 0
        %423 = vmatprep.subr.bf16.mxu0 0
        %424 = vmatpush1.bf16.msra.mxu0 0
        %425 = vmatprep.subr.bf16.mxu0 0
        %426 = vmatpush1.bf16.msra.mxu0 0
        %427 = vmatprep.subr.bf16.mxu0 0
        %428 = vmatpush1.bf16.msra.mxu0 0
        %429 = vmatprep.mubr.bf16.mxu0 0
        %430 = vmatmul.mubr.bf16.gmra.mrb[0].mxu0 %v386
        %v431 = vpop.f32.mrb[0].mxu0
        %v432 = vadd.f32 0.0, %v431
        %v433 = vpop.f32.mrb[0].mxu0
        %v434 = vadd.f32 0.0, %v433
        %v435 = vpop.f32.mrb[0].mxu0
        %v436 = vpop.f32.mrb[0].mxu0
        %437 = vdwg.mxu0
        %438 = vmatprep.subr.bf16.mxu0 0
        %439 = vmatpush1.bf16.msra.mxu0 %v395
        %440 = vmatprep.subr.bf16.mxu0 0
        %441 = vmatpush1.bf16.msra.mxu0 0
        %442 = vmatprep.subr.bf16.mxu0 0
        %443 = vmatpush1.bf16.msra.mxu0 0
        %444 = vmatprep.subr.bf16.mxu0 0
        %445 = vmatpush1.bf16.msra.mxu0 0
        %446 = vmatprep.subr.bf16.mxu0 0
        %447 = vmatpush1.bf16.msra.mxu0 0
        %448 = vmatprep.subr.bf16.mxu0 0
        %449 = vmatpush1.bf16.msra.mxu0 0
        %450 = vmatprep.subr.bf16.mxu0 0
        %451 = vmatpush1.bf16.msra.mxu0 0
        %452 = vmatprep.subr.bf16.mxu0 0
        %453 = vmatpush1.bf16.msra.mxu0 0
        %454 = vmatprep.subr.bf16.mxu0 0
        %455 = vmatpush1.bf16.msra.mxu0 0
        %456 = vmatprep.subr.bf16.mxu0 0
        %457 = vmatpush1.bf16.msra.mxu0 0
        %458 = vmatprep.subr.bf16.mxu0 0
        %459 = vmatpush1.bf16.msra.mxu0 0
        %460 = vmatprep.subr.bf16.mxu0 0
        %461 = vmatpush1.bf16.msra.mxu0 0
        %462 = vmatprep.subr.bf16.mxu0 0
        %463 = vmatpush1.bf16.msra.mxu0 0
        %464 = vmatprep.subr.bf16.mxu0 0
        %465 = vmatpush1.bf16.msra.mxu0 0
        %466 = vmatprep.subr.bf16.mxu0 0
        %467 = vmatpush1.bf16.msra.mxu0 0
        %468 = vmatprep.subr.bf16.mxu0 0
        %469 = vmatpush1.bf16.msra.mxu0 0
        %470 = vmatprep.mubr.bf16.mxu0 0
        %471 = vmatmul.mubr.bf16.gmra.mrb[0].mxu0 %v386
        %v472 = vpop.f32.mrb[0].mxu0
        %v473 = vadd.f32 0.0, %v472
        %v474 = vpop.f32.mrb[0].mxu0
        %v475 = vpop.f32.mrb[0].mxu0
        %v476 = vpop.f32.mrb[0].mxu0
        %477 = vdwg.mxu0
        %v478 = vadd.f32 %v367, %v432
        %v479 = vadd.f32 %v368, %v434
        %v480 = vadd.f32 %v369, %v473
        %v481 = vld [vmem:[%s239] sm:$0xf]
        %v483 = vunpack.c.l.b16 %v481
        %v484 = vpack.c.b16 %v483, %v483
        %485 = vrot.lane.b32.xlu0 %v484, 120
        %v486 = vpop.permute.xlu0 %485
        %487 = vrot.lane.b32.xlu0 %v263, 126
        %v488 = vpop.permute.xlu0 %487
        %489 = vrot.lane.b32.xlu0 %v271, 126
        %v490 = vpop.permute.xlu0 %489
        %491 = vrot.lane.b32.xlu0 %v270, 126
        %v492 = vpop.permute.xlu0 %491
        %vm493 = vcmask 1031168
        %v494 = vsel %vm493, %v488, %v490
        %v495 = vsel %vm493, %v490, %v492
        %v497 = vsel %vm272, %v486, 0
        %v500 = vsel %vm276, %v494, 0
        %v503 = vsel %vm276, %v495, 0
        %v506 = vsel %vm276, %v492, 0
        %508 = vmatprep.subr.bf16.mxu0 %v503
        %509 = vmatpush1.bf16.msra.mxu0 %v500
        %510 = vmatprep.subr.bf16.mxu0 0
        %511 = vmatpush1.bf16.msra.mxu0 0
        %512 = vmatprep.subr.bf16.mxu0 0
        %513 = vmatpush1.bf16.msra.mxu0 0
        %514 = vmatprep.subr.bf16.mxu0 0
        %515 = vmatpush1.bf16.msra.mxu0 0
        %516 = vmatprep.subr.bf16.mxu0 0
        %517 = vmatpush1.bf16.msra.mxu0 0
        %518 = vmatprep.subr.bf16.mxu0 0
        %519 = vmatpush1.bf16.msra.mxu0 0
        %520 = vmatprep.subr.bf16.mxu0 0
        %521 = vmatpush1.bf16.msra.mxu0 0
        %522 = vmatprep.subr.bf16.mxu0 0
        %523 = vmatpush1.bf16.msra.mxu0 0
        %524 = vmatprep.subr.bf16.mxu0 0
        %525 = vmatpush1.bf16.msra.mxu0 0
        %526 = vmatprep.subr.bf16.mxu0 0
        %527 = vmatpush1.bf16.msra.mxu0 0
        %528 = vmatprep.subr.bf16.mxu0 0
        %529 = vmatpush1.bf16.msra.mxu0 0
        %530 = vmatprep.subr.bf16.mxu0 0
        %531 = vmatpush1.bf16.msra.mxu0 0
        %532 = vmatprep.subr.bf16.mxu0 0
        %533 = vmatpush1.bf16.msra.mxu0 0
        %534 = vmatprep.subr.bf16.mxu0 0
        %535 = vmatpush1.bf16.msra.mxu0 0
        %536 = vmatprep.subr.bf16.mxu0 0
        %537 = vmatpush1.bf16.msra.mxu0 0
        %538 = vmatprep.subr.bf16.mxu0 0
        %539 = vmatpush1.bf16.msra.mxu0 0
        %540 = vmatprep.mubr.bf16.mxu0 0
        %541 = vmatmul.mubr.bf16.gmra.mrb[0].mxu0 %v497
        %v542 = vpop.f32.mrb[0].mxu0
        %v543 = vadd.f32 0.0, %v542
        %v544 = vpop.f32.mrb[0].mxu0
        %v545 = vadd.f32 0.0, %v544
        %v546 = vpop.f32.mrb[0].mxu0
        %v547 = vpop.f32.mrb[0].mxu0
        %548 = vdwg.mxu0
        %549 = vmatprep.subr.bf16.mxu0 0
        %550 = vmatpush1.bf16.msra.mxu0 %v506
        %551 = vmatprep.subr.bf16.mxu0 0
        %552 = vmatpush1.bf16.msra.mxu0 0
        %553 = vmatprep.subr.bf16.mxu0 0
        %554 = vmatpush1.bf16.msra.mxu0 0
        %555 = vmatprep.subr.bf16.mxu0 0
        %556 = vmatpush1.bf16.msra.mxu0 0
        %557 = vmatprep.subr.bf16.mxu0 0
        %558 = vmatpush1.bf16.msra.mxu0 0
        %559 = vmatprep.subr.bf16.mxu0 0
        %560 = vmatpush1.bf16.msra.mxu0 0
        %561 = vmatprep.subr.bf16.mxu0 0
        %562 = vmatpush1.bf16.msra.mxu0 0
        %563 = vmatprep.subr.bf16.mxu0 0
        %564 = vmatpush1.bf16.msra.mxu0 0
        %565 = vmatprep.subr.bf16.mxu0 0
        %566 = vmatpush1.bf16.msra.mxu0 0
        %567 = vmatprep.subr.bf16.mxu0 0
        %568 = vmatpush1.bf16.msra.mxu0 0
        %569 = vmatprep.subr.bf16.mxu0 0
        %570 = vmatpush1.bf16.msra.mxu0 0
        %571 = vmatprep.subr.bf16.mxu0 0
        %572 = vmatpush1.bf16.msra.mxu0 0
        %573 = vmatprep.subr.bf16.mxu0 0
        %574 = vmatpush1.bf16.msra.mxu0 0
        %575 = vmatprep.subr.bf16.mxu0 0
        %576 = vmatpush1.bf16.msra.mxu0 0
        %577 = vmatprep.subr.bf16.mxu0 0
        %578 = vmatpush1.bf16.msra.mxu0 0
        %579 = vmatprep.subr.bf16.mxu0 0
        %580 = vmatpush1.bf16.msra.mxu0 0
        %581 = vmatprep.mubr.bf16.mxu0 0
        %582 = vmatmul.mubr.bf16.gmra.mrb[0].mxu0 %v497
        %v583 = vpop.f32.mrb[0].mxu0
        %v584 = vadd.f32 0.0, %v583
        %v585 = vpop.f32.mrb[0].mxu0
        %v586 = vpop.f32.mrb[0].mxu0
        %v587 = vpop.f32.mrb[0].mxu0
        %588 = vdwg.mxu0
        %v589 = vadd.f32 %v478, %v543
        %v590 = vadd.f32 %v479, %v545
        %v591 = vadd.f32 %v480, %v584
        %v592 = vld [vmem:[%s205] sm:$0x3f]
        %v593 = vld [vmem:[%s239] sm:$0xf]
        %v595 = vunpack.c.l.b16 %v593
        %v596 = vpack.c.b16 %v595, %v595
        %597 = vrot.lane.b32.xlu0 %v596, 116
        %v598 = vpop.permute.xlu0 %597
        %v600 = vcombine.high %v592, %v592
        %v602 = vunpack.c.l.s4 1983009808
        %v603 = vunpack.c.0.s8 %v602
        %v604 = vlaneseq
        %v605 = vshrl.u32 %v604, 7
        %v606 = vsub.s32 %v603, %v605
        %v607 = vrot.slane %v592, %v606
        %v609 = vunpack.c.l.s4 1983009808
        %v610 = vunpack.c.0.s8 %v609
        %v611 = vlaneseq
        %v612 = vshrl.u32 %v611, 7
        %v613 = vsub.s32 %v610, %v612
        %v614 = vrot.slane %v600, %v613
        %v615 = vcombine.high %v607, %v607
        %616 = vrot.lane.b32.xlu0 %v607, 110
        %v617 = vpop.permute.xlu0 %616
        %618 = vrot.lane.b32.xlu0 %v615, 110
        %v619 = vpop.permute.xlu0 %618
        %620 = vrot.lane.b32.xlu0 %v614, 110
        %v621 = vpop.permute.xlu0 %620
        %vm622 = vcmask 900096
        %v623 = vsel %vm622, %v617, %v619
        %v624 = vsel %vm622, %v619, %v621
        %v626 = vsel %vm272, %v598, 0
        %v629 = vsel %vm276, %v623, 0
        %v632 = vsel %vm276, %v624, 0
        %v635 = vsel %vm276, %v621, 0
        %637 = vmatprep.subr.bf16.mxu0 %v632
        %638 = vmatpush1.bf16.msra.mxu0 %v629
        %639 = vmatprep.subr.bf16.mxu0 0
        %640 = vmatpush1.bf16.msra.mxu0 0
        %641 = vmatprep.subr.bf16.mxu0 0
        %642 = vmatpush1.bf16.msra.mxu0 0
        %643 = vmatprep.subr.bf16.mxu0 0
        %644 = vmatpush1.bf16.msra.mxu0 0
        %645 = vmatprep.subr.bf16.mxu0 0
        %646 = vmatpush1.bf16.msra.mxu0 0
        %647 = vmatprep.subr.bf16.mxu0 0
        %648 = vmatpush1.bf16.msra.mxu0 0
        %649 = vmatprep.subr.bf16.mxu0 0
        %650 = vmatpush1.bf16.msra.mxu0 0
        %651 = vmatprep.subr.bf16.mxu0 0
        %652 = vmatpush1.bf16.msra.mxu0 0
        %653 = vmatprep.subr.bf16.mxu0 0
        %654 = vmatpush1.bf16.msra.mxu0 0
        %655 = vmatprep.subr.bf16.mxu0 0
        %656 = vmatpush1.bf16.msra.mxu0 0
        %657 = vmatprep.subr.bf16.mxu0 0
        %658 = vmatpush1.bf16.msra.mxu0 0
        %659 = vmatprep.subr.bf16.mxu0 0
        %660 = vmatpush1.bf16.msra.mxu0 0
        %661 = vmatprep.subr.bf16.mxu0 0
        %662 = vmatpush1.bf16.msra.mxu0 0
        %663 = vmatprep.subr.bf16.mxu0 0
        %664 = vmatpush1.bf16.msra.mxu0 0
        %665 = vmatprep.subr.bf16.mxu0 0
        %666 = vmatpush1.bf16.msra.mxu0 0
        %667 = vmatprep.subr.bf16.mxu0 0
        %668 = vmatpush1.bf16.msra.mxu0 0
        %669 = vmatprep.mubr.bf16.mxu0 0
        %670 = vmatmul.mubr.bf16.gmra.mrb[0].mxu0 %v626
        %v671 = vpop.f32.mrb[0].mxu0
        %v672 = vadd.f32 0.0, %v671
        %v673 = vpop.f32.mrb[0].mxu0
        %v674 = vadd.f32 0.0, %v673
        %v675 = vpop.f32.mrb[0].mxu0
        %v676 = vpop.f32.mrb[0].mxu0
        %677 = vdwg.mxu0
        %678 = vmatprep.subr.bf16.mxu0 0
        %679 = vmatpush1.bf16.msra.mxu0 %v635
        %680 = vmatprep.subr.bf16.mxu0 0
        %681 = vmatpush1.bf16.msra.mxu0 0
        %682 = vmatprep.subr.bf16.mxu0 0
        %683 = vmatpush1.bf16.msra.mxu0 0
        %684 = vmatprep.subr.bf16.mxu0 0
        %685 = vmatpush1.bf16.msra.mxu0 0
        %686 = vmatprep.subr.bf16.mxu0 0
        %687 = vmatpush1.bf16.msra.mxu0 0
        %688 = vmatprep.subr.bf16.mxu0 0
        %689 = vmatpush1.bf16.msra.mxu0 0
        %690 = vmatprep.subr.bf16.mxu0 0
        %691 = vmatpush1.bf16.msra.mxu0 0
        %692 = vmatprep.subr.bf16.mxu0 0
        %693 = vmatpush1.bf16.msra.mxu0 0
        %694 = vmatprep.subr.bf16.mxu0 0
        %695 = vmatpush1.bf16.msra.mxu0 0
        %696 = vmatprep.subr.bf16.mxu0 0
        %697 = vmatpush1.bf16.msra.mxu0 0
        %698 = vmatprep.subr.bf16.mxu0 0
        %699 = vmatpush1.bf16.msra.mxu0 0
        %700 = vmatprep.subr.bf16.mxu0 0
        %701 = vmatpush1.bf16.msra.mxu0 0
        %702 = vmatprep.subr.bf16.mxu0 0
        %703 = vmatpush1.bf16.msra.mxu0 0
        %704 = vmatprep.subr.bf16.mxu0 0
        %705 = vmatpush1.bf16.msra.mxu0 0
        %706 = vmatprep.subr.bf16.mxu0 0
        %707 = vmatpush1.bf16.msra.mxu0 0
        %708 = vmatprep.subr.bf16.mxu0 0
        %709 = vmatpush1.bf16.msra.mxu0 0
        %710 = vmatprep.mubr.bf16.mxu0 0
        %711 = vmatmul.mubr.bf16.gmra.mrb[0].mxu0 %v626
        %v712 = vpop.f32.mrb[0].mxu0
        %v713 = vadd.f32 0.0, %v712
        %v714 = vpop.f32.mrb[0].mxu0
        %v715 = vpop.f32.mrb[0].mxu0
        %v716 = vpop.f32.mrb[0].mxu0
        %717 = vdwg.mxu0
        %v718 = vadd.f32 %v589, %v672
        %v719 = vadd.f32 %v590, %v674
        %v720 = vadd.f32 %v591, %v713
        %v721 = vld [vmem:[%s239] sm:$0xf]
        %v723 = vunpack.c.l.b16 %v721
        %v724 = vpack.c.b16 %v723, %v723
        %725 = vrot.lane.b32.xlu0 %v724, 112
        %v726 = vpop.permute.xlu0 %725
        %727 = vrot.lane.b32.xlu0 %v607, 109
        %v728 = vpop.permute.xlu0 %727
        %729 = vrot.lane.b32.xlu0 %v615, 109
        %v730 = vpop.permute.xlu0 %729
        %731 = vrot.lane.b32.xlu0 %v614, 109
        %v732 = vpop.permute.xlu0 %731
        %vm733 = vcmask 891904
        %v734 = vsel %vm733, %v728, %v730
        %v735 = vsel %vm733, %v730, %v732
        %v737 = vsel %vm272, %v726, 0
        %v740 = vsel %vm276, %v734, 0
        %v743 = vsel %vm276, %v735, 0
        %v746 = vsel %vm276, %v732, 0
        %748 = vmatprep.subr.bf16.mxu0 %v743
        %749 = vmatpush1.bf16.msra.mxu0 %v740
        %750 = vmatprep.subr.bf16.mxu0 0
        %751 = vmatpush1.bf16.msra.mxu0 0
        %752 = vmatprep.subr.bf16.mxu0 0
        %753 = vmatpush1.bf16.msra.mxu0 0
        %754 = vmatprep.subr.bf16.mxu0 0
        %755 = vmatpush1.bf16.msra.mxu0 0
        %756 = vmatprep.subr.bf16.mxu0 0
        %757 = vmatpush1.bf16.msra.mxu0 0
        %758 = vmatprep.subr.bf16.mxu0 0
        %759 = vmatpush1.bf16.msra.mxu0 0
        %760 = vmatprep.subr.bf16.mxu0 0
        %761 = vmatpush1.bf16.msra.mxu0 0
        %762 = vmatprep.subr.bf16.mxu0 0
        %763 = vmatpush1.bf16.msra.mxu0 0
        %764 = vmatprep.subr.bf16.mxu0 0
        %765 = vmatpush1.bf16.msra.mxu0 0
        %766 = vmatprep.subr.bf16.mxu0 0
        %767 = vmatpush1.bf16.msra.mxu0 0
        %768 = vmatprep.subr.bf16.mxu0 0
        %769 = vmatpush1.bf16.msra.mxu0 0
        %770 = vmatprep.subr.bf16.mxu0 0
        %771 = vmatpush1.bf16.msra.mxu0 0
        %772 = vmatprep.subr.bf16.mxu0 0
        %773 = vmatpush1.bf16.msra.mxu0 0
        %774 = vmatprep.subr.bf16.mxu0 0
        %775 = vmatpush1.bf16.msra.mxu0 0
        %776 = vmatprep.subr.bf16.mxu0 0
        %777 = vmatpush1.bf16.msra.mxu0 0
        %778 = vmatprep.subr.bf16.mxu0 0
        %779 = vmatpush1.bf16.msra.mxu0 0
        %780 = vmatprep.mubr.bf16.mxu0 0
        %781 = vmatmul.mubr.bf16.gmra.mrb[0].mxu0 %v737
        %v782 = vpop.f32.mrb[0].mxu0
        %v783 = vadd.f32 0.0, %v782
        %v784 = vpop.f32.mrb[0].mxu0
        %v785 = vadd.f32 0.0, %v784
        %v786 = vpop.f32.mrb[0].mxu0
        %v787 = vpop.f32.mrb[0].mxu0
        %788 = vdwg.mxu0
        %789 = vmatprep.subr.bf16.mxu0 0
        %790 = vmatpush1.bf16.msra.mxu0 %v746
        %791 = vmatprep.subr.bf16.mxu0 0
        %792 = vmatpush1.bf16.msra.mxu0 0
        %793 = vmatprep.subr.bf16.mxu0 0
        %794 = vmatpush1.bf16.msra.mxu0 0
        %795 = vmatprep.subr.bf16.mxu0 0
        %796 = vmatpush1.bf16.msra.mxu0 0
        %797 = vmatprep.subr.bf16.mxu0 0
        %798 = vmatpush1.bf16.msra.mxu0 0
        %799 = vmatprep.subr.bf16.mxu0 0
        %800 = vmatpush1.bf16.msra.mxu0 0
        %801 = vmatprep.subr.bf16.mxu0 0
        %802 = vmatpush1.bf16.msra.mxu0 0
        %803 = vmatprep.subr.bf16.mxu0 0
        %804 = vmatpush1.bf16.msra.mxu0 0
        %805 = vmatprep.subr.bf16.mxu0 0
        %806 = vmatpush1.bf16.msra.mxu0 0
        %807 = vmatprep.subr.bf16.mxu0 0
        %808 = vmatpush1.bf16.msra.mxu0 0
        %809 = vmatprep.subr.bf16.mxu0 0
        %810 = vmatpush1.bf16.msra.mxu0 0
        %811 = vmatprep.subr.bf16.mxu0 0
        %812 = vmatpush1.bf16.msra.mxu0 0
        %813 = vmatprep.subr.bf16.mxu0 0
        %814 = vmatpush1.bf16.msra.mxu0 0
        %815 = vmatprep.subr.bf16.mxu0 0
        %816 = vmatpush1.bf16.msra.mxu0 0
        %817 = vmatprep.subr.bf16.mxu0 0
        %818 = vmatpush1.bf16.msra.mxu0 0
        %819 = vmatprep.subr.bf16.mxu0 0
        %820 = vmatpush1.bf16.msra.mxu0 0
        %821 = vmatprep.mubr.bf16.mxu0 0
        %822 = vmatmul.mubr.bf16.gmra.mrb[0].mxu0 %v737
        %v823 = vpop.f32.mrb[0].mxu0
        %v824 = vadd.f32 0.0, %v823
        %v825 = vpop.f32.mrb[0].mxu0
        %v826 = vpop.f32.mrb[0].mxu0
        %v827 = vpop.f32.mrb[0].mxu0
        %828 = vdwg.mxu0
        %v829 = vadd.f32 %v718, %v783
        %v830 = vadd.f32 %v719, %v785
        %v831 = vadd.f32 %v720, %v824
        %v832 = vld [vmem:[%s239] sm:$0xf]
        %v834 = vunpack.c.l.b16 %v832
        %v835 = vpack.c.b16 %v834, %v834
        %836 = vrot.lane.b32.xlu0 %v835, 108
        %v837 = vpop.permute.xlu0 %836
        %838 = vrot.lane.b32.xlu0 %v607, 108
        %v839 = vpop.permute.xlu0 %838
        %840 = vrot.lane.b32.xlu0 %v615, 108
        %v841 = vpop.permute.xlu0 %840
        %842 = vrot.lane.b32.xlu0 %v614, 108
        %v843 = vpop.permute.xlu0 %842
        %vm844 = vcmask 883712
        %v845 = vsel %vm844, %v839, %v841
        %v846 = vsel %vm844, %v841, %v843
        %v848 = vsel %vm272, %v837, 0
        %v851 = vsel %vm276, %v845, 0
        %v854 = vsel %vm276, %v846, 0
        %v857 = vsel %vm276, %v843, 0
        %859 = vmatprep.subr.bf16.mxu0 %v854
        %860 = vmatpush1.bf16.msra.mxu0 %v851
        %861 = vmatprep.subr.bf16.mxu0 0
        %862 = vmatpush1.bf16.msra.mxu0 0
        %863 = vmatprep.subr.bf16.mxu0 0
        %864 = vmatpush1.bf16.msra.mxu0 0
        %865 = vmatprep.subr.bf16.mxu0 0
        %866 = vmatpush1.bf16.msra.mxu0 0
        %867 = vmatprep.subr.bf16.mxu0 0
        %868 = vmatpush1.bf16.msra.mxu0 0
        %869 = vmatprep.subr.bf16.mxu0 0
        %870 = vmatpush1.bf16.msra.mxu0 0
        %871 = vmatprep.subr.bf16.mxu0 0
        %872 = vmatpush1.bf16.msra.mxu0 0
        %873 = vmatprep.subr.bf16.mxu0 0
        %874 = vmatpush1.bf16.msra.mxu0 0
        %875 = vmatprep.subr.bf16.mxu0 0
        %876 = vmatpush1.bf16.msra.mxu0 0
        %877 = vmatprep.subr.bf16.mxu0 0
        %878 = vmatpush1.bf16.msra.mxu0 0
        %879 = vmatprep.subr.bf16.mxu0 0
        %880 = vmatpush1.bf16.msra.mxu0 0
        %881 = vmatprep.subr.bf16.mxu0 0
        %882 = vmatpush1.bf16.msra.mxu0 0
        %883 = vmatprep.subr.bf16.mxu0 0
        %884 = vmatpush1.bf16.msra.mxu0 0
        %885 = vmatprep.subr.bf16.mxu0 0
        %886 = vmatpush1.bf16.msra.mxu0 0
        %887 = vmatprep.subr.bf16.mxu0 0
        %888 = vmatpush1.bf16.msra.mxu0 0
        %889 = vmatprep.subr.bf16.mxu0 0
        %890 = vmatpush1.bf16.msra.mxu0 0
        %891 = vmatprep.mubr.bf16.mxu0 0
        %892 = vmatmul.mubr.bf16.gmra.mrb[0].mxu0 %v848
        %v893 = vpop.f32.mrb[0].mxu0
        %v894 = vadd.f32 0.0, %v893
        %v895 = vpop.f32.mrb[0].mxu0
        %v896 = vadd.f32 0.0, %v895
        %v897 = vpop.f32.mrb[0].mxu0
        %v898 = vpop.f32.mrb[0].mxu0
        %899 = vdwg.mxu0
        %900 = vmatprep.subr.bf16.mxu0 0
        %901 = vmatpush1.bf16.msra.mxu0 %v857
        %902 = vmatprep.subr.bf16.mxu0 0
        %903 = vmatpush1.bf16.msra.mxu0 0
        %904 = vmatprep.subr.bf16.mxu0 0
        %905 = vmatpush1.bf16.msra.mxu0 0
        %906 = vmatprep.subr.bf16.mxu0 0
        %907 = vmatpush1.bf16.msra.mxu0 0
        %908 = vmatprep.subr.bf16.mxu0 0
        %909 = vmatpush1.bf16.msra.mxu0 0
        %910 = vmatprep.subr.bf16.mxu0 0
        %911 = vmatpush1.bf16.msra.mxu0 0
        %912 = vmatprep.subr.bf16.mxu0 0
        %913 = vmatpush1.bf16.msra.mxu0 0
        %914 = vmatprep.subr.bf16.mxu0 0
        %915 = vmatpush1.bf16.msra.mxu0 0
        %916 = vmatprep.subr.bf16.mxu0 0
        %917 = vmatpush1.bf16.msra.mxu0 0
        %918 = vmatprep.subr.bf16.mxu0 0
        %919 = vmatpush1.bf16.msra.mxu0 0
        %920 = vmatprep.subr.bf16.mxu0 0
        %921 = vmatpush1.bf16.msra.mxu0 0
        %922 = vmatprep.subr.bf16.mxu0 0
        %923 = vmatpush1.bf16.msra.mxu0 0
        %924 = vmatprep.subr.bf16.mxu0 0
        %925 = vmatpush1.bf16.msra.mxu0 0
        %926 = vmatprep.subr.bf16.mxu0 0
        %927 = vmatpush1.bf16.msra.mxu0 0
        %928 = vmatprep.subr.bf16.mxu0 0
        %929 = vmatpush1.bf16.msra.mxu0 0
        %930 = vmatprep.subr.bf16.mxu0 0
        %931 = vmatpush1.bf16.msra.mxu0 0
        %932 = vmatprep.mubr.bf16.mxu0 0
        %933 = vmatmul.mubr.bf16.gmra.mrb[0].mxu0 %v848
        %v934 = vpop.f32.mrb[0].mxu0
        %v935 = vadd.f32 0.0, %v934
        %v936 = vpop.f32.mrb[0].mxu0
        %v937 = vpop.f32.mrb[0].mxu0
        %v938 = vpop.f32.mrb[0].mxu0
        %939 = vdwg.mxu0
        %v940 = vadd.f32 %v829, %v894
        %v941 = vadd.f32 %v830, %v896
        %v942 = vadd.f32 %v831, %v935
        %v943 = vld [vmem:[%s205] sm:$0x3f]
        %v944 = vld [vmem:[%s239] sm:$0xf]
        %v946 = vunpack.c.l.b16 %v944
        %v947 = vpack.c.b16 %v946, %v946
        %948 = vrot.lane.b32.xlu0 %v947, 104
        %v949 = vpop.permute.xlu0 %948
        %v951 = vcombine.high %v943, %v943
        %v953 = vunpack.c.l.s4 1983009808
        %v954 = vunpack.c.0.s8 %v953
        %v955 = vlaneseq
        %v956 = vshrl.u32 %v955, 7
        %v957 = vsub.s32 %v954, %v956
        %v958 = vrot.slane %v943, %v957
        %v960 = vunpack.c.l.s4 1983009808
        %v961 = vunpack.c.0.s8 %v960
        %v962 = vlaneseq
        %v963 = vshrl.u32 %v962, 7
        %v964 = vsub.s32 %v961, %v963
        %v965 = vrot.slane %v951, %v964
        %v966 = vcombine.high %v958, %v958
        %967 = vrot.lane.b32.xlu0 %v958, 92
        %v968 = vpop.permute.xlu0 %967
        %969 = vrot.lane.b32.xlu0 %v966, 92
        %v970 = vpop.permute.xlu0 %969
        %971 = vrot.lane.b32.xlu0 %v965, 92
        %v972 = vpop.permute.xlu0 %971
        %vm973 = vcmask 752640
        %v974 = vsel %vm973, %v968, %v970
        %v975 = vsel %vm973, %v970, %v972
        %v977 = vsel %vm272, %v949, 0
        %v980 = vsel %vm276, %v974, 0
        %v983 = vsel %vm276, %v975, 0
        %v986 = vsel %vm276, %v972, 0
        %988 = vmatprep.subr.bf16.mxu0 %v983
        %989 = vmatpush1.bf16.msra.mxu0 %v980
        %990 = vmatprep.subr.bf16.mxu0 0
        %991 = vmatpush1.bf16.msra.mxu0 0
        %992 = vmatprep.subr.bf16.mxu0 0
        %993 = vmatpush1.bf16.msra.mxu0 0
        %994 = vmatprep.subr.bf16.mxu0 0
        %995 = vmatpush1.bf16.msra.mxu0 0
        %996 = vmatprep.subr.bf16.mxu0 0
        %997 = vmatpush1.bf16.msra.mxu0 0
        %998 = vmatprep.subr.bf16.mxu0 0
        %999 = vmatpush1.bf16.msra.mxu0 0
        %1000 = vmatprep.subr.bf16.mxu0 0
        %1001 = vmatpush1.bf16.msra.mxu0 0
        %1002 = vmatprep.subr.bf16.mxu0 0
        %1003 = vmatpush1.bf16.msra.mxu0 0
        %1004 = vmatprep.subr.bf16.mxu0 0
        %1005 = vmatpush1.bf16.msra.mxu0 0
        %1006 = vmatprep.subr.bf16.mxu0 0
        %1007 = vmatpush1.bf16.msra.mxu0 0
        %1008 = vmatprep.subr.bf16.mxu0 0
        %1009 = vmatpush1.bf16.msra.mxu0 0
        %1010 = vmatprep.subr.bf16.mxu0 0
        %1011 = vmatpush1.bf16.msra.mxu0 0
        %1012 = vmatprep.subr.bf16.mxu0 0
        %1013 = vmatpush1.bf16.msra.mxu0 0
        %1014 = vmatprep.subr.bf16.mxu0 0
        %1015 = vmatpush1.bf16.msra.mxu0 0
        %1016 = vmatprep.subr.bf16.mxu0 0
        %1017 = vmatpush1.bf16.msra.mxu0 0
        %1018 = vmatprep.subr.bf16.mxu0 0
        %1019 = vmatpush1.bf16.msra.mxu0 0
        %1020 = vmatprep.mubr.bf16.mxu0 0
        %1021 = vmatmul.mubr.bf16.gmra.mrb[0].mxu0 %v977
        %v1022 = vpop.f32.mrb[0].mxu0
        %v1023 = vadd.f32 0.0, %v1022
        %v1024 = vpop.f32.mrb[0].mxu0
        %v1025 = vadd.f32 0.0, %v1024
        %v1026 = vpop.f32.mrb[0].mxu0
        %v1027 = vpop.f32.mrb[0].mxu0
        %1028 = vdwg.mxu0
        %1029 = vmatprep.subr.bf16.mxu0 0
        %1030 = vmatpush1.bf16.msra.mxu0 %v986
        %1031 = vmatprep.subr.bf16.mxu0 0
        %1032 = vmatpush1.bf16.msra.mxu0 0
        %1033 = vmatprep.subr.bf16.mxu0 0
        %1034 = vmatpush1.bf16.msra.mxu0 0
        %1035 = vmatprep.subr.bf16.mxu0 0
        %1036 = vmatpush1.bf16.msra.mxu0 0
        %1037 = vmatprep.subr.bf16.mxu0 0
        %1038 = vmatpush1.bf16.msra.mxu0 0
        %1039 = vmatprep.subr.bf16.mxu0 0
        %1040 = vmatpush1.bf16.msra.mxu0 0
        %1041 = vmatprep.subr.bf16.mxu0 0
        %1042 = vmatpush1.bf16.msra.mxu0 0
        %1043 = vmatprep.subr.bf16.mxu0 0
        %1044 = vmatpush1.bf16.msra.mxu0 0
        %1045 = vmatprep.subr.bf16.mxu0 0
        %1046 = vmatpush1.bf16.msra.mxu0 0
        %1047 = vmatprep.subr.bf16.mxu0 0
        %1048 = vmatpush1.bf16.msra.mxu0 0
        %1049 = vmatprep.subr.bf16.mxu0 0
        %1050 = vmatpush1.bf16.msra.mxu0 0
        %1051 = vmatprep.subr.bf16.mxu0 0
        %1052 = vmatpush1.bf16.msra.mxu0 0
        %1053 = vmatprep.subr.bf16.mxu0 0
        %1054 = vmatpush1.bf16.msra.mxu0 0
        %1055 = vmatprep.subr.bf16.mxu0 0
        %1056 = vmatpush1.bf16.msra.mxu0 0
        %1057 = vmatprep.subr.bf16.mxu0 0
        %1058 = vmatpush1.bf16.msra.mxu0 0
        %1059 = vmatprep.subr.bf16.mxu0 0
        %1060 = vmatpush1.bf16.msra.mxu0 0
        %1061 = vmatprep.mubr.bf16.mxu0 0
        %1062 = vmatmul.mubr.bf16.gmra.mrb[0].mxu0 %v977
        %v1063 = vpop.f32.mrb[0].mxu0
        %v1064 = vadd.f32 0.0, %v1063
        %v1065 = vpop.f32.mrb[0].mxu0
        %v1066 = vpop.f32.mrb[0].mxu0
        %v1067 = vpop.f32.mrb[0].mxu0
        %1068 = vdwg.mxu0
        %v1069 = vadd.f32 %v940, %v1023
        %v1070 = vadd.f32 %v941, %v1025
        %v1071 = vadd.f32 %v942, %v1064
        %v1072 = vld [vmem:[%s239] sm:$0xf]
        %v1074 = vunpack.c.l.b16 %v1072
        %v1075 = vpack.c.b16 %v1074, %v1074
        %1076 = vrot.lane.b32.xlu0 %v1075, 100
        %v1077 = vpop.permute.xlu0 %1076
        %1078 = vrot.lane.b32.xlu0 %v958, 91
        %v1079 = vpop.permute.xlu0 %1078
        %1080 = vrot.lane.b32.xlu0 %v966, 91
        %v1081 = vpop.permute.xlu0 %1080
        %1082 = vrot.lane.b32.xlu0 %v965, 91
        %v1083 = vpop.permute.xlu0 %1082
        %vm1084 = vcmask 744448
        %v1085 = vsel %vm1084, %v1079, %v1081
        %v1086 = vsel %vm1084, %v1081, %v1083
        %v1088 = vsel %vm272, %v1077, 0
        %v1091 = vsel %vm276, %v1085, 0
        %v1094 = vsel %vm276, %v1086, 0
        %v1097 = vsel %vm276, %v1083, 0
        %1099 = vmatprep.subr.bf16.mxu0 %v1094
        %1100 = vmatpush1.bf16.msra.mxu0 %v1091
        %1101 = vmatprep.subr.bf16.mxu0 0
        %1102 = vmatpush1.bf16.msra.mxu0 0
        %1103 = vmatprep.subr.bf16.mxu0 0
        %1104 = vmatpush1.bf16.msra.mxu0 0
        %1105 = vmatprep.subr.bf16.mxu0 0
        %1106 = vmatpush1.bf16.msra.mxu0 0
        %1107 = vmatprep.subr.bf16.mxu0 0
        %1108 = vmatpush1.bf16.msra.mxu0 0
        %1109 = vmatprep.subr.bf16.mxu0 0
        %1110 = vmatpush1.bf16.msra.mxu0 0
        %1111 = vmatprep.subr.bf16.mxu0 0
        %1112 = vmatpush1.bf16.msra.mxu0 0
        %1113 = vmatprep.subr.bf16.mxu0 0
        %1114 = vmatpush1.bf16.msra.mxu0 0
        %1115 = vmatprep.subr.bf16.mxu0 0
        %1116 = vmatpush1.bf16.msra.mxu0 0
        %1117 = vmatprep.subr.bf16.mxu0 0
        %1118 = vmatpush1.bf16.msra.mxu0 0
        %1119 = vmatprep.subr.bf16.mxu0 0
        %1120 = vmatpush1.bf16.msra.mxu0 0
        %1121 = vmatprep.subr.bf16.mxu0 0
        %1122 = vmatpush1.bf16.msra.mxu0 0
        %1123 = vmatprep.subr.bf16.mxu0 0
        %1124 = vmatpush1.bf16.msra.mxu0 0
        %1125 = vmatprep.subr.bf16.mxu0 0
        %1126 = vmatpush1.bf16.msra.mxu0 0
        %1127 = vmatprep.subr.bf16.mxu0 0
        %1128 = vmatpush1.bf16.msra.mxu0 0
        %1129 = vmatprep.subr.bf16.mxu0 0
        %1130 = vmatpush1.bf16.msra.mxu0 0
        %1131 = vmatprep.mubr.bf16.mxu0 0
        %1132 = vmatmul.mubr.bf16.gmra.mrb[0].mxu0 %v1088
        %v1133 = vpop.f32.mrb[0].mxu0
        %v1134 = vadd.f32 0.0, %v1133
        %v1135 = vpop.f32.mrb[0].mxu0
        %v1136 = vadd.f32 0.0, %v1135
        %v1137 = vpop.f32.mrb[0].mxu0
        %v1138 = vpop.f32.mrb[0].mxu0
        %1139 = vdwg.mxu0
        %1140 = vmatprep.subr.bf16.mxu0 0
        %1141 = vmatpush1.bf16.msra.mxu0 %v1097
        %1142 = vmatprep.subr.bf16.mxu0 0
        %1143 = vmatpush1.bf16.msra.mxu0 0
        %1144 = vmatprep.subr.bf16.mxu0 0
        %1145 = vmatpush1.bf16.msra.mxu0 0
        %1146 = vmatprep.subr.bf16.mxu0 0
        %1147 = vmatpush1.bf16.msra.mxu0 0
        %1148 = vmatprep.subr.bf16.mxu0 0
        %1149 = vmatpush1.bf16.msra.mxu0 0
        %1150 = vmatprep.subr.bf16.mxu0 0
        %1151 = vmatpush1.bf16.msra.mxu0 0
        %1152 = vmatprep.subr.bf16.mxu0 0
        %1153 = vmatpush1.bf16.msra.mxu0 0
        %1154 = vmatprep.subr.bf16.mxu0 0
        %1155 = vmatpush1.bf16.msra.mxu0 0
        %1156 = vmatprep.subr.bf16.mxu0 0
        %1157 = vmatpush1.bf16.msra.mxu0 0
        %1158 = vmatprep.subr.bf16.mxu0 0
        %1159 = vmatpush1.bf16.msra.mxu0 0
        %1160 = vmatprep.subr.bf16.mxu0 0
        %1161 = vmatpush1.bf16.msra.mxu0 0
        %1162 = vmatprep.subr.bf16.mxu0 0
        %1163 = vmatpush1.bf16.msra.mxu0 0
        %1164 = vmatprep.subr.bf16.mxu0 0
        %1165 = vmatpush1.bf16.msra.mxu0 0
        %1166 = vmatprep.subr.bf16.mxu0 0
        %1167 = vmatpush1.bf16.msra.mxu0 0
        %1168 = vmatprep.subr.bf16.mxu0 0
        %1169 = vmatpush1.bf16.msra.mxu0 0
        %1170 = vmatprep.subr.bf16.mxu0 0
        %1171 = vmatpush1.bf16.msra.mxu0 0
        %1172 = vmatprep.mubr.bf16.mxu0 0
        %1173 = vmatmul.mubr.bf16.gmra.mrb[0].mxu0 %v1088
        %v1174 = vpop.f32.mrb[0].mxu0
        %v1175 = vadd.f32 0.0, %v1174
        %v1176 = vpop.f32.mrb[0].mxu0
        %v1177 = vpop.f32.mrb[0].mxu0
        %v1178 = vpop.f32.mrb[0].mxu0
        %1179 = vdwg.mxu0
        %v1180 = vadd.f32 %v1069, %v1134
        %v1181 = vadd.f32 %v1070, %v1136
        %v1182 = vadd.f32 %v1071, %v1175
        %v1183 = vld [vmem:[%s239] sm:$0xf]
        %v1185 = vunpack.c.l.b16 %v1183
        %v1186 = vpack.c.b16 %v1185, %v1185
        %1187 = vrot.lane.b32.xlu0 %v1186, 96
        %v1188 = vpop.permute.xlu0 %1187
        %1189 = vrot.lane.b32.xlu0 %v958, 90
        %v1190 = vpop.permute.xlu0 %1189
        %1191 = vrot.lane.b32.xlu0 %v966, 90
        %v1192 = vpop.permute.xlu0 %1191
        %1193 = vrot.lane.b32.xlu0 %v965, 90
        %v1194 = vpop.permute.xlu0 %1193
        %vm1195 = vcmask 736256
        %v1196 = vsel %vm1195, %v1190, %v1192
        %v1197 = vsel %vm1195, %v1192, %v1194
        %v1199 = vsel %vm272, %v1188, 0
        %v1202 = vsel %vm276, %v1196, 0
        %v1205 = vsel %vm276, %v1197, 0
        %v1208 = vsel %vm276, %v1194, 0
        %1210 = vmatprep.subr.bf16.mxu0 %v1205
        %1211 = vmatpush1.bf16.msra.mxu0 %v1202
        %1212 = vmatprep.subr.bf16.mxu0 0
        %1213 = vmatpush1.bf16.msra.mxu0 0
        %1214 = vmatprep.subr.bf16.mxu0 0
        %1215 = vmatpush1.bf16.msra.mxu0 0
        %1216 = vmatprep.subr.bf16.mxu0 0
        %1217 = vmatpush1.bf16.msra.mxu0 0
        %1218 = vmatprep.subr.bf16.mxu0 0
        %1219 = vmatpush1.bf16.msra.mxu0 0
        %1220 = vmatprep.subr.bf16.mxu0 0
        %1221 = vmatpush1.bf16.msra.mxu0 0
        %1222 = vmatprep.subr.bf16.mxu0 0
        %1223 = vmatpush1.bf16.msra.mxu0 0
        %1224 = vmatprep.subr.bf16.mxu0 0
        %1225 = vmatpush1.bf16.msra.mxu0 0
        %1226 = vmatprep.subr.bf16.mxu0 0
        %1227 = vmatpush1.bf16.msra.mxu0 0
        %1228 = vmatprep.subr.bf16.mxu0 0
        %1229 = vmatpush1.bf16.msra.mxu0 0
        %1230 = vmatprep.subr.bf16.mxu0 0
        %1231 = vmatpush1.bf16.msra.mxu0 0
        %1232 = vmatprep.subr.bf16.mxu0 0
        %1233 = vmatpush1.bf16.msra.mxu0 0
        %1234 = vmatprep.subr.bf16.mxu0 0
        %1235 = vmatpush1.bf16.msra.mxu0 0
        %1236 = vmatprep.subr.bf16.mxu0 0
        %1237 = vmatpush1.bf16.msra.mxu0 0
        %1238 = vmatprep.subr.bf16.mxu0 0
        %1239 = vmatpush1.bf16.msra.mxu0 0
        %1240 = vmatprep.subr.bf16.mxu0 0
        %1241 = vmatpush1.bf16.msra.mxu0 0
        %1242 = vmatprep.mubr.bf16.mxu0 0
        %1243 = vmatmul.mubr.bf16.gmra.mrb[0].mxu0 %v1199
        %v1244 = vpop.f32.mrb[0].mxu0
        %v1245 = vadd.f32 0.0, %v1244
        %v1246 = vpop.f32.mrb[0].mxu0
        %v1247 = vadd.f32 0.0, %v1246
        %v1248 = vpop.f32.mrb[0].mxu0
        %v1249 = vpop.f32.mrb[0].mxu0
        %1250 = vdwg.mxu0
        %1251 = vmatprep.subr.bf16.mxu0 0
        %1252 = vmatpush1.bf16.msra.mxu0 %v1208
        %1253 = vmatprep.subr.bf16.mxu0 0
        %1254 = vmatpush1.bf16.msra.mxu0 0
        %1255 = vmatprep.subr.bf16.mxu0 0
        %1256 = vmatpush1.bf16.msra.mxu0 0
        %1257 = vmatprep.subr.bf16.mxu0 0
        %1258 = vmatpush1.bf16.msra.mxu0 0
        %1259 = vmatprep.subr.bf16.mxu0 0
        %1260 = vmatpush1.bf16.msra.mxu0 0
        %1261 = vmatprep.subr.bf16.mxu0 0
        %1262 = vmatpush1.bf16.msra.mxu0 0
        %1263 = vmatprep.subr.bf16.mxu0 0
        %1264 = vmatpush1.bf16.msra.mxu0 0
        %1265 = vmatprep.subr.bf16.mxu0 0
        %1266 = vmatpush1.bf16.msra.mxu0 0
        %1267 = vmatprep.subr.bf16.mxu0 0
        %1268 = vmatpush1.bf16.msra.mxu0 0
        %1269 = vmatprep.subr.bf16.mxu0 0
        %1270 = vmatpush1.bf16.msra.mxu0 0
        %1271 = vmatprep.subr.bf16.mxu0 0
        %1272 = vmatpush1.bf16.msra.mxu0 0
        %1273 = vmatprep.subr.bf16.mxu0 0
        %1274 = vmatpush1.bf16.msra.mxu0 0
        %1275 = vmatprep.subr.bf16.mxu0 0
        %1276 = vmatpush1.bf16.msra.mxu0 0
        %1277 = vmatprep.subr.bf16.mxu0 0
        %1278 = vmatpush1.bf16.msra.mxu0 0
        %1279 = vmatprep.subr.bf16.mxu0 0
        %1280 = vmatpush1.bf16.msra.mxu0 0
        %1281 = vmatprep.subr.bf16.mxu0 0
        %1282 = vmatpush1.bf16.msra.mxu0 0
        %1283 = vmatprep.mubr.bf16.mxu0 0
        %1284 = vmatmul.mubr.bf16.gmra.mrb[0].mxu0 %v1199
        %v1285 = vpop.f32.mrb[0].mxu0
        %v1286 = vadd.f32 0.0, %v1285
        %v1287 = vpop.f32.mrb[0].mxu0
        %v1288 = vpop.f32.mrb[0].mxu0
        %v1289 = vpop.f32.mrb[0].mxu0
        %1290 = vdwg.mxu0
        %v1291 = vadd.f32 %v1180, %v1245
        %v1292 = vadd.f32 %v1181, %v1247
        %v1293 = vadd.f32 %v1182, %v1286
        %v1294 = vmax.f32 %v1291, 0.0
        %v1295 = vmax.f32 %v1292, 0.0
        %v1296 = vmax.f32 %v1293, 0.0
        %v1297 = vpack.c.bf16 %v1294, %v1294
        %v1298 = vpack.c.bf16 %v1295, %v1295
        %v1299 = vpack.c.bf16 %v1296, %v1296
        %v1302 = vunpack.c.l.s4 1966171168
        %v1303 = vunpack.c.0.s8 %v1302
        %v1304 = vlaneseq
        %v1305 = vshrl.u32 %v1304, 7
        %v1306 = vsub.s32 %v1303, %v1305
        %v1307 = vrot.slane %v1297, %v1306
        %v1308 = vcombine.high %v1307, %v1307
        %v1310 = vunpack.c.l.s4 1966171168
        %v1311 = vunpack.c.0.s8 %v1310
        %v1312 = vlaneseq
        %v1313 = vshrl.u32 %v1312, 7
        %v1314 = vsub.s32 %v1311, %v1313
        %v1315 = vrot.slane %v1307, %v1314
        %v1317 = vunpack.c.l.s4 1966171168
        %v1318 = vunpack.c.0.s8 %v1317
        %v1319 = vlaneseq
        %v1320 = vshrl.u32 %v1319, 7
        %v1321 = vsub.s32 %v1318, %v1320
        %v1322 = vrot.slane %v1308, %v1321
        %v1323 = vcombine.high %v1315, %v1315
        %v1324 = vcombine.high %v1322, %v1322
        %v1325 = vunpack.i.l.s16 %v1315
        %v1326 = vunpack.i.h.s16 %v1315
        %v1327 = vunpack.i.l.s16 %v1322
        %v1328 = vunpack.i.h.s16 %v1322
        %v1329 = vunpack.i.l.s16 %v1323
        %v1330 = vunpack.i.h.s16 %v1323
        %v1331 = vunpack.i.l.s16 %v1324
        %v1332 = vunpack.i.h.s16 %v1324
        %v1333 = vpack.i.b16 %v1325, %v1325
        %v1334 = vpack.i.b16 %v1326, %v1326
        %v1335 = vpack.i.b16 %v1327, %v1327
        %v1336 = vpack.i.b16 %v1328, %v1328
        %v1337 = vpack.i.b16 %v1329, %v1329
        %v1338 = vpack.i.b16 %v1330, %v1330
        %v1339 = vpack.i.b16 %v1331, %v1331
        %v1340 = vpack.i.b16 %v1332, %v1332
        %v1342 = vunpack.c.l.s4 286326784
        %v1343 = vunpack.c.0.s8 %v1342
        %v1344 = vlaneseq
        %v1345 = vshrl.u32 %v1344, 7
        %v1346 = vsub.s32 %v1343, %v1345
        %v1347 = vrot.slane %v1333, %v1346
        %v1349 = vunpack.c.l.s4 286326784
        %v1350 = vunpack.c.0.s8 %v1349
        %v1351 = vlaneseq
        %v1352 = vshrl.u32 %v1351, 7
        %v1353 = vsub.s32 %v1350, %v1352
        %v1354 = vrot.slane %v1334, %v1353
        %v1356 = vunpack.c.l.s4 286326784
        %v1357 = vunpack.c.0.s8 %v1356
        %v1358 = vlaneseq
        %v1359 = vshrl.u32 %v1358, 7
        %v1360 = vsub.s32 %v1357, %v1359
        %v1361 = vrot.slane %v1335, %v1360
        %v1363 = vunpack.c.l.s4 286326784
        %v1364 = vunpack.c.0.s8 %v1363
        %v1365 = vlaneseq
        %v1366 = vshrl.u32 %v1365, 7
        %v1367 = vsub.s32 %v1364, %v1366
        %v1368 = vrot.slane %v1336, %v1367
        %v1370 = vunpack.c.l.s4 286326784
        %v1371 = vunpack.c.0.s8 %v1370
        %v1372 = vlaneseq
        %v1373 = vshrl.u32 %v1372, 7
        %v1374 = vsub.s32 %v1371, %v1373
        %v1375 = vrot.slane %v1337, %v1374
        %v1377 = vunpack.c.l.s4 286326784
        %v1378 = vunpack.c.0.s8 %v1377
        %v1379 = vlaneseq
        %v1380 = vshrl.u32 %v1379, 7
        %v1381 = vsub.s32 %v1378, %v1380
        %v1382 = vrot.slane %v1338, %v1381
        %v1384 = vunpack.c.l.s4 286326784
        %v1385 = vunpack.c.0.s8 %v1384
        %v1386 = vlaneseq
        %v1387 = vshrl.u32 %v1386, 7
        %v1388 = vsub.s32 %v1385, %v1387
        %v1389 = vrot.slane %v1339, %v1388
        %v1391 = vunpack.c.l.s4 286326784
        %v1392 = vunpack.c.0.s8 %v1391
        %v1393 = vlaneseq
        %v1394 = vshrl.u32 %v1393, 7
        %v1395 = vsub.s32 %v1392, %v1394
        %v1396 = vrot.slane %v1340, %v1395
        %vm1405 = vcmask 122880
        %vm1406 = vsmask.f32 256
        %vm1407 = vmand %vm1405, %vm1406
        %v1408 = vld [vmem:[%s235] sm:$0x1]
        %v1409 = vsel %vm1407, %v1347, %v1408
        %1410 = vst [vmem:[%s235] sm:$0x1] %v1409
        %v1411 = vld [vmem:[%s235 + $0x8] sm:$0x1]
        %v1412 = vsel %vm1407, %v1354, %v1411
        %1413 = vst [vmem:[%s235 + $0x8] sm:$0x1] %v1412
        %v1414 = vld [vmem:[%s235 + $0x10] sm:$0x1]
        %v1415 = vsel %vm1407, %v1361, %v1414
        %1416 = vst [vmem:[%s235 + $0x10] sm:$0x1] %v1415
        %v1417 = vld [vmem:[%s235 + $0x18] sm:$0x1]
        %v1418 = vsel %vm1407, %v1368, %v1417
        %1419 = vst [vmem:[%s235 + $0x18] sm:$0x1] %v1418
        %v1420 = vld [vmem:[%s235 + $0x20] sm:$0x1]
        %v1421 = vsel %vm1407, %v1375, %v1420
        %1422 = vst [vmem:[%s235 + $0x20] sm:$0x1] %v1421
        %v1423 = vld [vmem:[%s235 + $0x28] sm:$0x1]
        %v1424 = vsel %vm1407, %v1382, %v1423
        %1425 = vst [vmem:[%s235 + $0x28] sm:$0x1] %v1424
        %v1426 = vld [vmem:[%s235 + $0x30] sm:$0x1]
        %v1427 = vsel %vm1407, %v1389, %v1426
        %1428 = vst [vmem:[%s235 + $0x30] sm:$0x1] %v1427
        %v1429 = vld [vmem:[%s235 + $0x38] sm:$0x1]
        %v1430 = vsel %vm1407, %v1396, %v1429
        %1431 = vst [vmem:[%s235 + $0x38] sm:$0x1] %v1430
        %1432 = vrot.lane.b32.xlu0 %v1347, 110
        %v1433 = vpop.permute.xlu0 %1432
        %1434 = vrot.lane.b32.xlu0 %v1354, 110
        %v1435 = vpop.permute.xlu0 %1434
        %1436 = vrot.lane.b32.xlu0 %v1361, 110
        %v1437 = vpop.permute.xlu0 %1436
        %1438 = vrot.lane.b32.xlu0 %v1368, 110
        %v1439 = vpop.permute.xlu0 %1438
        %1440 = vrot.lane.b32.xlu0 %v1375, 110
        %v1441 = vpop.permute.xlu0 %1440
        %1442 = vrot.lane.b32.xlu0 %v1382, 110
        %v1443 = vpop.permute.xlu0 %1442
        %1444 = vrot.lane.b32.xlu0 %v1389, 110
        %v1445 = vpop.permute.xlu0 %1444
        %1446 = vrot.lane.b32.xlu0 %v1396, 110
        %v1447 = vpop.permute.xlu0 %1446
        %vm1456 = vsmask.f32 7938
        %vm1457 = vmand %vm1405, %vm1456
        %v1458 = vld [vmem:[%s235] sm:$0x1]
        %v1459 = vsel %vm1457, %v1433, %v1458
        %1460 = vst [vmem:[%s235] sm:$0x1] %v1459
        %v1461 = vld [vmem:[%s235 + $0x8] sm:$0x1]
        %v1462 = vsel %vm1457, %v1435, %v1461
        %1463 = vst [vmem:[%s235 + $0x8] sm:$0x1] %v1462
        %v1464 = vld [vmem:[%s235 + $0x10] sm:$0x1]
        %v1465 = vsel %vm1457, %v1437, %v1464
        %1466 = vst [vmem:[%s235 + $0x10] sm:$0x1] %v1465
        %v1467 = vld [vmem:[%s235 + $0x18] sm:$0x1]
        %v1468 = vsel %vm1457, %v1439, %v1467
        %1469 = vst [vmem:[%s235 + $0x18] sm:$0x1] %v1468
        %v1470 = vld [vmem:[%s235 + $0x20] sm:$0x1]
        %v1471 = vsel %vm1457, %v1441, %v1470
        %1472 = vst [vmem:[%s235 + $0x20] sm:$0x1] %v1471
        %v1473 = vld [vmem:[%s235 + $0x28] sm:$0x1]
        %v1474 = vsel %vm1457, %v1443, %v1473
        %1475 = vst [vmem:[%s235 + $0x28] sm:$0x1] %v1474
        %v1476 = vld [vmem:[%s235 + $0x30] sm:$0x1]
        %v1477 = vsel %vm1457, %v1445, %v1476
        %1478 = vst [vmem:[%s235 + $0x30] sm:$0x1] %v1477
        %v1479 = vld [vmem:[%s235 + $0x38] sm:$0x1]
        %v1480 = vsel %vm1457, %v1447, %v1479
        %1481 = vst [vmem:[%s235 + $0x38] sm:$0x1] %v1480
        %1482 = vrot.lane.b32.xlu0 %v1347, 92
        %v1483 = vpop.permute.xlu0 %1482
        %1484 = vrot.lane.b32.xlu0 %v1354, 92
        %v1485 = vpop.permute.xlu0 %1484
        %1486 = vrot.lane.b32.xlu0 %v1361, 92
        %v1487 = vpop.permute.xlu0 %1486
        %1488 = vrot.lane.b32.xlu0 %v1368, 92
        %v1489 = vpop.permute.xlu0 %1488
        %1490 = vrot.lane.b32.xlu0 %v1375, 92
        %v1491 = vpop.permute.xlu0 %1490
        %1492 = vrot.lane.b32.xlu0 %v1382, 92
        %v1493 = vpop.permute.xlu0 %1492
        %1494 = vrot.lane.b32.xlu0 %v1389, 92
        %v1495 = vpop.permute.xlu0 %1494
        %1496 = vrot.lane.b32.xlu0 %v1396, 92
        %v1497 = vpop.permute.xlu0 %1496
        %vm1506 = vcmask 123905
        %vm1507 = vsmask.f32 1280
        %vm1508 = vmand %vm1506, %vm1507
        %v1509 = vld [vmem:[%s235] sm:$0x2]
        %v1510 = vsel %vm1508, %v1483, %v1509
        %1511 = vst [vmem:[%s235] sm:$0x2] %v1510
        %v1512 = vld [vmem:[%s235 + $0x8] sm:$0x2]
        %v1513 = vsel %vm1508, %v1485, %v1512
        %1514 = vst [vmem:[%s235 + $0x8] sm:$0x2] %v1513
        %v1515 = vld [vmem:[%s235 + $0x10] sm:$0x2]
        %v1516 = vsel %vm1508, %v1487, %v1515
        %1517 = vst [vmem:[%s235 + $0x10] sm:$0x2] %v1516
        %v1518 = vld [vmem:[%s235 + $0x18] sm:$0x2]
        %v1519 = vsel %vm1508, %v1489, %v1518
        %1520 = vst [vmem:[%s235 + $0x18] sm:$0x2] %v1519
        %v1521 = vld [vmem:[%s235 + $0x20] sm:$0x2]
        %v1522 = vsel %vm1508, %v1491, %v1521
        %1523 = vst [vmem:[%s235 + $0x20] sm:$0x2] %v1522
        %v1524 = vld [vmem:[%s235 + $0x28] sm:$0x2]
        %v1525 = vsel %vm1508, %v1493, %v1524
        %1526 = vst [vmem:[%s235 + $0x28] sm:$0x2] %v1525
        %v1527 = vld [vmem:[%s235 + $0x30] sm:$0x2]
        %v1528 = vsel %vm1508, %v1495, %v1527
        %1529 = vst [vmem:[%s235 + $0x30] sm:$0x2] %v1528
        %v1530 = vld [vmem:[%s235 + $0x38] sm:$0x2]
        %v1531 = vsel %vm1508, %v1497, %v1530
        %1532 = vst [vmem:[%s235 + $0x38] sm:$0x2] %v1531
        %1533 = vrot.lane.b32.xlu0 %v1347, 74
        %v1534 = vpop.permute.xlu0 %1533
        %1535 = vrot.lane.b32.xlu0 %v1354, 74
        %v1536 = vpop.permute.xlu0 %1535
        %1537 = vrot.lane.b32.xlu0 %v1361, 74
        %v1538 = vpop.permute.xlu0 %1537
        %1539 = vrot.lane.b32.xlu0 %v1368, 74
        %v1540 = vpop.permute.xlu0 %1539
        %1541 = vrot.lane.b32.xlu0 %v1375, 74
        %v1542 = vpop.permute.xlu0 %1541
        %1543 = vrot.lane.b32.xlu0 %v1382, 74
        %v1544 = vpop.permute.xlu0 %1543
        %1545 = vrot.lane.b32.xlu0 %v1389, 74
        %v1546 = vpop.permute.xlu0 %1545
        %1547 = vrot.lane.b32.xlu0 %v1396, 74
        %v1548 = vpop.permute.xlu0 %1547
        %vm1557 = vsmask.f32 7942
        %vm1558 = vmand %vm1506, %vm1557
        %v1559 = vld [vmem:[%s235] sm:$0x2]
        %v1560 = vsel %vm1558, %v1534, %v1559
        %1561 = vst [vmem:[%s235] sm:$0x2] %v1560
        %v1562 = vld [vmem:[%s235 + $0x8] sm:$0x2]
        %v1563 = vsel %vm1558, %v1536, %v1562
        %1564 = vst [vmem:[%s235 + $0x8] sm:$0x2] %v1563
        %v1565 = vld [vmem:[%s235 + $0x10] sm:$0x2]
        %v1566 = vsel %vm1558, %v1538, %v1565
        %1567 = vst [vmem:[%s235 + $0x10] sm:$0x2] %v1566
        %v1568 = vld [vmem:[%s235 + $0x18] sm:$0x2]
        %v1569 = vsel %vm1558, %v1540, %v1568
        %1570 = vst [vmem:[%s235 + $0x18] sm:$0x2] %v1569
        %v1571 = vld [vmem:[%s235 + $0x20] sm:$0x2]
        %v1572 = vsel %vm1558, %v1542, %v1571
        %1573 = vst [vmem:[%s235 + $0x20] sm:$0x2] %v1572
        %v1574 = vld [vmem:[%s235 + $0x28] sm:$0x2]
        %v1575 = vsel %vm1558, %v1544, %v1574
        %1576 = vst [vmem:[%s235 + $0x28] sm:$0x2] %v1575
        %v1577 = vld [vmem:[%s235 + $0x30] sm:$0x2]
        %v1578 = vsel %vm1558, %v1546, %v1577
        %1579 = vst [vmem:[%s235 + $0x30] sm:$0x2] %v1578
        %v1580 = vld [vmem:[%s235 + $0x38] sm:$0x2]
        %v1581 = vsel %vm1558, %v1548, %v1580
        %1582 = vst [vmem:[%s235 + $0x38] sm:$0x2] %v1581
        %1583 = vrot.lane.b32.xlu0 %v1347, 56
        %v1584 = vpop.permute.xlu0 %1583
        %1585 = vrot.lane.b32.xlu0 %v1354, 56
        %v1586 = vpop.permute.xlu0 %1585
        %1587 = vrot.lane.b32.xlu0 %v1361, 56
        %v1588 = vpop.permute.xlu0 %1587
        %1589 = vrot.lane.b32.xlu0 %v1368, 56
        %v1590 = vpop.permute.xlu0 %1589
        %1591 = vrot.lane.b32.xlu0 %v1375, 56
        %v1592 = vpop.permute.xlu0 %1591
        %1593 = vrot.lane.b32.xlu0 %v1382, 56
        %v1594 = vpop.permute.xlu0 %1593
        %1595 = vrot.lane.b32.xlu0 %v1389, 56
        %v1596 = vpop.permute.xlu0 %1595
        %1597 = vrot.lane.b32.xlu0 %v1396, 56
        %v1598 = vpop.permute.xlu0 %1597
        %vm1607 = vcmask 124930
        %vm1608 = vsmask.f32 2304
        %vm1609 = vmand %vm1607, %vm1608
        %v1610 = vld [vmem:[%s235] sm:$0x4]
        %v1611 = vsel %vm1609, %v1584, %v1610
        %1612 = vst [vmem:[%s235] sm:$0x4] %v1611
        %v1613 = vld [vmem:[%s235 + $0x8] sm:$0x4]
        %v1614 = vsel %vm1609, %v1586, %v1613
        %1615 = vst [vmem:[%s235 + $0x8] sm:$0x4] %v1614
        %v1616 = vld [vmem:[%s235 + $0x10] sm:$0x4]
        %v1617 = vsel %vm1609, %v1588, %v1616
        %1618 = vst [vmem:[%s235 + $0x10] sm:$0x4] %v1617
        %v1619 = vld [vmem:[%s235 + $0x18] sm:$0x4]
        %v1620 = vsel %vm1609, %v1590, %v1619
        %1621 = vst [vmem:[%s235 + $0x18] sm:$0x4] %v1620
        %v1622 = vld [vmem:[%s235 + $0x20] sm:$0x4]
        %v1623 = vsel %vm1609, %v1592, %v1622
        %1624 = vst [vmem:[%s235 + $0x20] sm:$0x4] %v1623
        %v1625 = vld [vmem:[%s235 + $0x28] sm:$0x4]
        %v1626 = vsel %vm1609, %v1594, %v1625
        %1627 = vst [vmem:[%s235 + $0x28] sm:$0x4] %v1626
        %v1628 = vld [vmem:[%s235 + $0x30] sm:$0x4]
        %v1629 = vsel %vm1609, %v1596, %v1628
        %1630 = vst [vmem:[%s235 + $0x30] sm:$0x4] %v1629
        %v1631 = vld [vmem:[%s235 + $0x38] sm:$0x4]
        %v1632 = vsel %vm1609, %v1598, %v1631
        %1633 = vst [vmem:[%s235 + $0x38] sm:$0x4] %v1632
        %1634 = vrot.lane.b32.xlu0 %v1347, 38
        %v1635 = vpop.permute.xlu0 %1634
        %1636 = vrot.lane.b32.xlu0 %v1354, 38
        %v1637 = vpop.permute.xlu0 %1636
        %1638 = vrot.lane.b32.xlu0 %v1361, 38
        %v1639 = vpop.permute.xlu0 %1638
        %1640 = vrot.lane.b32.xlu0 %v1368, 38
        %v1641 = vpop.permute.xlu0 %1640
        %1642 = vrot.lane.b32.xlu0 %v1375, 38
        %v1643 = vpop.permute.xlu0 %1642
        %1644 = vrot.lane.b32.xlu0 %v1382, 38
        %v1645 = vpop.permute.xlu0 %1644
        %1646 = vrot.lane.b32.xlu0 %v1389, 38
        %v1647 = vpop.permute.xlu0 %1646
        %1648 = vrot.lane.b32.xlu0 %v1396, 38
        %v1649 = vpop.permute.xlu0 %1648
        %vm1658 = vsmask.f32 7946
        %vm1659 = vmand %vm1607, %vm1658
        %v1660 = vld [vmem:[%s235] sm:$0x4]
        %v1661 = vsel %vm1659, %v1635, %v1660
        %1662 = vst [vmem:[%s235] sm:$0x4] %v1661
        %v1663 = vld [vmem:[%s235 + $0x8] sm:$0x4]
        %v1664 = vsel %vm1659, %v1637, %v1663
        %1665 = vst [vmem:[%s235 + $0x8] sm:$0x4] %v1664
        %v1666 = vld [vmem:[%s235 + $0x10] sm:$0x4]
        %v1667 = vsel %vm1659, %v1639, %v1666
        %1668 = vst [vmem:[%s235 + $0x10] sm:$0x4] %v1667
        %v1669 = vld [vmem:[%s235 + $0x18] sm:$0x4]
        %v1670 = vsel %vm1659, %v1641, %v1669
        %1671 = vst [vmem:[%s235 + $0x18] sm:$0x4] %v1670
        %v1672 = vld [vmem:[%s235 + $0x20] sm:$0x4]
        %v1673 = vsel %vm1659, %v1643, %v1672
        %1674 = vst [vmem:[%s235 + $0x20] sm:$0x4] %v1673
        %v1675 = vld [vmem:[%s235 + $0x28] sm:$0x4]
        %v1676 = vsel %vm1659, %v1645, %v1675
        %1677 = vst [vmem:[%s235 + $0x28] sm:$0x4] %v1676
        %v1678 = vld [vmem:[%s235 + $0x30] sm:$0x4]
        %v1679 = vsel %vm1659, %v1647, %v1678
        %1680 = vst [vmem:[%s235 + $0x30] sm:$0x4] %v1679
        %v1681 = vld [vmem:[%s235 + $0x38] sm:$0x4]
        %v1682 = vsel %vm1659, %v1649, %v1681
        %1683 = vst [vmem:[%s235 + $0x38] sm:$0x4] %v1682
        %1684 = vrot.lane.b32.xlu0 %v1347, 20
        %v1685 = vpop.permute.xlu0 %1684
        %1686 = vrot.lane.b32.xlu0 %v1354, 20
        %v1687 = vpop.permute.xlu0 %1686
        %1688 = vrot.lane.b32.xlu0 %v1361, 20
        %v1689 = vpop.permute.xlu0 %1688
        %1690 = vrot.lane.b32.xlu0 %v1368, 20
        %v1691 = vpop.permute.xlu0 %1690
        %1692 = vrot.lane.b32.xlu0 %v1375, 20
        %v1693 = vpop.permute.xlu0 %1692
        %1694 = vrot.lane.b32.xlu0 %v1382, 20
        %v1695 = vpop.permute.xlu0 %1694
        %1696 = vrot.lane.b32.xlu0 %v1389, 20
        %v1697 = vpop.permute.xlu0 %1696
        %1698 = vrot.lane.b32.xlu0 %v1396, 20
        %v1699 = vpop.permute.xlu0 %1698
        %vm1708 = vcmask 125955
        %vm1709 = vsmask.f32 3328
        %vm1710 = vmand %vm1708, %vm1709
        %v1711 = vld [vmem:[%s235] sm:$0x8]
        %v1712 = vsel %vm1710, %v1685, %v1711
        %1713 = vst [vmem:[%s235] sm:$0x8] %v1712
        %v1714 = vld [vmem:[%s235 + $0x8] sm:$0x8]
        %v1715 = vsel %vm1710, %v1687, %v1714
        %1716 = vst [vmem:[%s235 + $0x8] sm:$0x8] %v1715
        %v1717 = vld [vmem:[%s235 + $0x10] sm:$0x8]
        %v1718 = vsel %vm1710, %v1689, %v1717
        %1719 = vst [vmem:[%s235 + $0x10] sm:$0x8] %v1718
        %v1720 = vld [vmem:[%s235 + $0x18] sm:$0x8]
        %v1721 = vsel %vm1710, %v1691, %v1720
        %1722 = vst [vmem:[%s235 + $0x18] sm:$0x8] %v1721
        %v1723 = vld [vmem:[%s235 + $0x20] sm:$0x8]
        %v1724 = vsel %vm1710, %v1693, %v1723
        %1725 = vst [vmem:[%s235 + $0x20] sm:$0x8] %v1724
        %v1726 = vld [vmem:[%s235 + $0x28] sm:$0x8]
        %v1727 = vsel %vm1710, %v1695, %v1726
        %1728 = vst [vmem:[%s235 + $0x28] sm:$0x8] %v1727
        %v1729 = vld [vmem:[%s235 + $0x30] sm:$0x8]
        %v1730 = vsel %vm1710, %v1697, %v1729
        %1731 = vst [vmem:[%s235 + $0x30] sm:$0x8] %v1730
        %v1732 = vld [vmem:[%s235 + $0x38] sm:$0x8]
        %v1733 = vsel %vm1710, %v1699, %v1732
        %1734 = vst [vmem:[%s235 + $0x38] sm:$0x8] %v1733
        %v1736 = vcombine.low %v1297, %v1298
        %v1738 = vunpack.c.l.s4 1966171168
        %v1739 = vunpack.c.0.s8 %v1738
        %v1740 = vlaneseq
        %v1741 = vshrl.u32 %v1740, 7
        %v1742 = vsub.s32 %v1739, %v1741
        %v1743 = vrot.slane %v1736, %v1742
        %v1744 = vcombine.high %v1743, %v1743
        %v1746 = vunpack.c.l.s4 1966171168
        %v1747 = vunpack.c.0.s8 %v1746
        %v1748 = vlaneseq
        %v1749 = vshrl.u32 %v1748, 7
        %v1750 = vsub.s32 %v1747, %v1749
        %v1751 = vrot.slane %v1743, %v1750
        %v1753 = vunpack.c.l.s4 1966171168
        %v1754 = vunpack.c.0.s8 %v1753
        %v1755 = vlaneseq
        %v1756 = vshrl.u32 %v1755, 7
        %v1757 = vsub.s32 %v1754, %v1756
        %v1758 = vrot.slane %v1744, %v1757
        %v1759 = vcombine.high %v1751, %v1751
        %v1760 = vcombine.high %v1758, %v1758
        %v1761 = vunpack.i.l.s16 %v1751
        %v1762 = vunpack.i.h.s16 %v1751
        %v1763 = vunpack.i.l.s16 %v1758
        %v1764 = vunpack.i.h.s16 %v1758
        %v1765 = vunpack.i.l.s16 %v1759
        %v1766 = vunpack.i.h.s16 %v1759
        %v1767 = vunpack.i.l.s16 %v1760
        %v1768 = vunpack.i.h.s16 %v1760
        %v1769 = vpack.i.b16 %v1761, %v1761
        %v1770 = vpack.i.b16 %v1762, %v1762
        %v1771 = vpack.i.b16 %v1763, %v1763
        %v1772 = vpack.i.b16 %v1764, %v1764
        %v1773 = vpack.i.b16 %v1765, %v1765
        %v1774 = vpack.i.b16 %v1766, %v1766
        %v1775 = vpack.i.b16 %v1767, %v1767
        %v1776 = vpack.i.b16 %v1768, %v1768
        %v1778 = vunpack.c.l.s4 286326784
        %v1779 = vunpack.c.0.s8 %v1778
        %v1780 = vlaneseq
        %v1781 = vshrl.u32 %v1780, 7
        %v1782 = vsub.s32 %v1779, %v1781
        %v1783 = vrot.slane %v1769, %v1782
        %v1785 = vunpack.c.l.s4 286326784
        %v1786 = vunpack.c.0.s8 %v1785
        %v1787 = vlaneseq
        %v1788 = vshrl.u32 %v1787, 7
        %v1789 = vsub.s32 %v1786, %v1788
        %v1790 = vrot.slane %v1770, %v1789
        %v1792 = vunpack.c.l.s4 286326784
        %v1793 = vunpack.c.0.s8 %v1792
        %v1794 = vlaneseq
        %v1795 = vshrl.u32 %v1794, 7
        %v1796 = vsub.s32 %v1793, %v1795
        %v1797 = vrot.slane %v1771, %v1796
        %v1799 = vunpack.c.l.s4 286326784
        %v1800 = vunpack.c.0.s8 %v1799
        %v1801 = vlaneseq
        %v1802 = vshrl.u32 %v1801, 7
        %v1803 = vsub.s32 %v1800, %v1802
        %v1804 = vrot.slane %v1772, %v1803
        %v1806 = vunpack.c.l.s4 286326784
        %v1807 = vunpack.c.0.s8 %v1806
        %v1808 = vlaneseq
        %v1809 = vshrl.u32 %v1808, 7
        %v1810 = vsub.s32 %v1807, %v1809
        %v1811 = vrot.slane %v1773, %v1810
        %v1813 = vunpack.c.l.s4 286326784
        %v1814 = vunpack.c.0.s8 %v1813
        %v1815 = vlaneseq
        %v1816 = vshrl.u32 %v1815, 7
        %v1817 = vsub.s32 %v1814, %v1816
        %v1818 = vrot.slane %v1774, %v1817
        %v1820 = vunpack.c.l.s4 286326784
        %v1821 = vunpack.c.0.s8 %v1820
        %v1822 = vlaneseq
        %v1823 = vshrl.u32 %v1822, 7
        %v1824 = vsub.s32 %v1821, %v1823
        %v1825 = vrot.slane %v1775, %v1824
        %v1827 = vunpack.c.l.s4 286326784
        %v1828 = vunpack.c.0.s8 %v1827
        %v1829 = vlaneseq
        %v1830 = vshrl.u32 %v1829, 7
        %v1831 = vsub.s32 %v1828, %v1830
        %v1832 = vrot.slane %v1776, %v1831
        %1833 = vrot.lane.b32.xlu0 %v1783, 2
        %v1834 = vpop.permute.xlu0 %1833
        %1835 = vrot.lane.b32.xlu0 %v1790, 2
        %v1836 = vpop.permute.xlu0 %1835
        %1837 = vrot.lane.b32.xlu0 %v1797, 2
        %v1838 = vpop.permute.xlu0 %1837
        %1839 = vrot.lane.b32.xlu0 %v1804, 2
        %v1840 = vpop.permute.xlu0 %1839
        %1841 = vrot.lane.b32.xlu0 %v1811, 2
        %v1842 = vpop.permute.xlu0 %1841
        %1843 = vrot.lane.b32.xlu0 %v1818, 2
        %v1844 = vpop.permute.xlu0 %1843
        %1845 = vrot.lane.b32.xlu0 %v1825, 2
        %v1846 = vpop.permute.xlu0 %1845
        %1847 = vrot.lane.b32.xlu0 %v1832, 2
        %v1848 = vpop.permute.xlu0 %1847
        %v1849 = vrot.slane %v1834, 4
        %v1850 = vrot.slane %v1836, 4
        %v1851 = vrot.slane %v1838, 4
        %v1852 = vrot.slane %v1840, 4
        %v1853 = vrot.slane %v1842, 4
        %v1854 = vrot.slane %v1844, 4
        %v1855 = vrot.slane %v1846, 4
        %v1856 = vrot.slane %v1848, 4
        %vm1857 = vcmask 15360
        %v1858 = vsel %vm1857, %v1834, %v1849
        %v1859 = vsel %vm1857, %v1836, %v1850
        %v1860 = vsel %vm1857, %v1838, %v1851
        %v1861 = vsel %vm1857, %v1840, %v1852
        %v1862 = vsel %vm1857, %v1842, %v1853
        %v1863 = vsel %vm1857, %v1844, %v1854
        %v1864 = vsel %vm1857, %v1846, %v1855
        %v1865 = vsel %vm1857, %v1848, %v1856
        %vm1874 = vsmask.f32 7950
        %vm1875 = vmand %vm1708, %vm1874
        %v1876 = vld [vmem:[%s235] sm:$0x8]
        %v1877 = vsel %vm1875, %v1858, %v1876
        %1878 = vst [vmem:[%s235] sm:$0x8] %v1877
        %v1879 = vld [vmem:[%s235 + $0x8] sm:$0x8]
        %v1880 = vsel %vm1875, %v1859, %v1879
        %1881 = vst [vmem:[%s235 + $0x8] sm:$0x8] %v1880
        %v1882 = vld [vmem:[%s235 + $0x10] sm:$0x8]
        %v1883 = vsel %vm1875, %v1860, %v1882
        %1884 = vst [vmem:[%s235 + $0x10] sm:$0x8] %v1883
        %v1885 = vld [vmem:[%s235 + $0x18] sm:$0x8]
        %v1886 = vsel %vm1875, %v1861, %v1885
        %1887 = vst [vmem:[%s235 + $0x18] sm:$0x8] %v1886
        %v1888 = vld [vmem:[%s235 + $0x20] sm:$0x8]
        %v1889 = vsel %vm1875, %v1862, %v1888
        %1890 = vst [vmem:[%s235 + $0x20] sm:$0x8] %v1889
        %v1891 = vld [vmem:[%s235 + $0x28] sm:$0x8]
        %v1892 = vsel %vm1875, %v1863, %v1891
        %1893 = vst [vmem:[%s235 + $0x28] sm:$0x8] %v1892
        %v1894 = vld [vmem:[%s235 + $0x30] sm:$0x8]
        %v1895 = vsel %vm1875, %v1864, %v1894
        %1896 = vst [vmem:[%s235 + $0x30] sm:$0x8] %v1895
        %v1897 = vld [vmem:[%s235 + $0x38] sm:$0x8]
        %v1898 = vsel %vm1875, %v1865, %v1897
        %1899 = vst [vmem:[%s235 + $0x38] sm:$0x8] %v1898
        %v1901 = vunpack.c.l.s4 1966171168
        %v1902 = vunpack.c.0.s8 %v1901
        %v1903 = vlaneseq
        %v1904 = vshrl.u32 %v1903, 7
        %v1905 = vsub.s32 %v1902, %v1904
        %v1906 = vrot.slane %v1298, %v1905
        %v1907 = vcombine.high %v1906, %v1906
        %v1909 = vunpack.c.l.s4 1966171168
        %v1910 = vunpack.c.0.s8 %v1909
        %v1911 = vlaneseq
        %v1912 = vshrl.u32 %v1911, 7
        %v1913 = vsub.s32 %v1910, %v1912
        %v1914 = vrot.slane %v1906, %v1913
        %v1916 = vunpack.c.l.s4 1966171168
        %v1917 = vunpack.c.0.s8 %v1916
        %v1918 = vlaneseq
        %v1919 = vshrl.u32 %v1918, 7
        %v1920 = vsub.s32 %v1917, %v1919
        %v1921 = vrot.slane %v1907, %v1920
        %v1922 = vcombine.high %v1914, %v1914
        %v1923 = vcombine.high %v1921, %v1921
        %v1924 = vunpack.i.l.s16 %v1914
        %v1925 = vunpack.i.h.s16 %v1914
        %v1926 = vunpack.i.l.s16 %v1921
        %v1927 = vunpack.i.h.s16 %v1921
        %v1928 = vunpack.i.l.s16 %v1922
        %v1929 = vunpack.i.h.s16 %v1922
        %v1930 = vunpack.i.l.s16 %v1923
        %v1931 = vunpack.i.h.s16 %v1923
        %v1932 = vpack.i.b16 %v1924, %v1924
        %v1933 = vpack.i.b16 %v1925, %v1925
        %v1934 = vpack.i.b16 %v1926, %v1926
        %v1935 = vpack.i.b16 %v1927, %v1927
        %v1936 = vpack.i.b16 %v1928, %v1928
        %v1937 = vpack.i.b16 %v1929, %v1929
        %v1938 = vpack.i.b16 %v1930, %v1930
        %v1939 = vpack.i.b16 %v1931, %v1931
        %v1941 = vunpack.c.l.s4 286326784
        %v1942 = vunpack.c.0.s8 %v1941
        %v1943 = vlaneseq
        %v1944 = vshrl.u32 %v1943, 7
        %v1945 = vsub.s32 %v1942, %v1944
        %v1946 = vrot.slane %v1932, %v1945
        %v1948 = vunpack.c.l.s4 286326784
        %v1949 = vunpack.c.0.s8 %v1948
        %v1950 = vlaneseq
        %v1951 = vshrl.u32 %v1950, 7
        %v1952 = vsub.s32 %v1949, %v1951
        %v1953 = vrot.slane %v1933, %v1952
        %v1955 = vunpack.c.l.s4 286326784
        %v1956 = vunpack.c.0.s8 %v1955
        %v1957 = vlaneseq
        %v1958 = vshrl.u32 %v1957, 7
        %v1959 = vsub.s32 %v1956, %v1958
        %v1960 = vrot.slane %v1934, %v1959
        %v1962 = vunpack.c.l.s4 286326784
        %v1963 = vunpack.c.0.s8 %v1962
        %v1964 = vlaneseq
        %v1965 = vshrl.u32 %v1964, 7
        %v1966 = vsub.s32 %v1963, %v1965
        %v1967 = vrot.slane %v1935, %v1966
        %v1969 = vunpack.c.l.s4 286326784
        %v1970 = vunpack.c.0.s8 %v1969
        %v1971 = vlaneseq
        %v1972 = vshrl.u32 %v1971, 7
        %v1973 = vsub.s32 %v1970, %v1972
        %v1974 = vrot.slane %v1936, %v1973
        %v1976 = vunpack.c.l.s4 286326784
        %v1977 = vunpack.c.0.s8 %v1976
        %v1978 = vlaneseq
        %v1979 = vshrl.u32 %v1978, 7
        %v1980 = vsub.s32 %v1977, %v1979
        %v1981 = vrot.slane %v1937, %v1980
        %v1983 = vunpack.c.l.s4 286326784
        %v1984 = vunpack.c.0.s8 %v1983
        %v1985 = vlaneseq
        %v1986 = vshrl.u32 %v1985, 7
        %v1987 = vsub.s32 %v1984, %v1986
        %v1988 = vrot.slane %v1938, %v1987
        %v1990 = vunpack.c.l.s4 286326784
        %v1991 = vunpack.c.0.s8 %v1990
        %v1992 = vlaneseq
        %v1993 = vshrl.u32 %v1992, 7
        %v1994 = vsub.s32 %v1991, %v1993
        %v1995 = vrot.slane %v1939, %v1994
        %1996 = vrot.lane.b32.xlu0 %v1946, 112
        %v1997 = vpop.permute.xlu0 %1996
        %1998 = vrot.lane.b32.xlu0 %v1953, 112
        %v1999 = vpop.permute.xlu0 %1998
        %2000 = vrot.lane.b32.xlu0 %v1960, 112
        %v2001 = vpop.permute.xlu0 %2000
        %2002 = vrot.lane.b32.xlu0 %v1967, 112
        %v2003 = vpop.permute.xlu0 %2002
        %2004 = vrot.lane.b32.xlu0 %v1974, 112
        %v2005 = vpop.permute.xlu0 %2004
        %2006 = vrot.lane.b32.xlu0 %v1981, 112
        %v2007 = vpop.permute.xlu0 %2006
        %2008 = vrot.lane.b32.xlu0 %v1988, 112
        %v2009 = vpop.permute.xlu0 %2008
        %2010 = vrot.lane.b32.xlu0 %v1995, 112
        %v2011 = vpop.permute.xlu0 %2010
        %v2020 = vld [vmem:[%s235 + $0x4] sm:$0x1]
        %v2021 = vsel %vm1407, %v1997, %v2020
        %2022 = vst [vmem:[%s235 + $0x4] sm:$0x1] %v2021
        %v2023 = vld [vmem:[%s235 + $0xc] sm:$0x1]
        %v2024 = vsel %vm1407, %v1999, %v2023
        %2025 = vst [vmem:[%s235 + $0xc] sm:$0x1] %v2024
        %v2026 = vld [vmem:[%s235 + $0x14] sm:$0x1]
        %v2027 = vsel %vm1407, %v2001, %v2026
        %2028 = vst [vmem:[%s235 + $0x14] sm:$0x1] %v2027
        %v2029 = vld [vmem:[%s235 + $0x1c] sm:$0x1]
        %v2030 = vsel %vm1407, %v2003, %v2029
        %2031 = vst [vmem:[%s235 + $0x1c] sm:$0x1] %v2030
        %v2032 = vld [vmem:[%s235 + $0x24] sm:$0x1]
        %v2033 = vsel %vm1407, %v2005, %v2032
        %2034 = vst [vmem:[%s235 + $0x24] sm:$0x1] %v2033
        %v2035 = vld [vmem:[%s235 + $0x2c] sm:$0x1]
        %v2036 = vsel %vm1407, %v2007, %v2035
        %2037 = vst [vmem:[%s235 + $0x2c] sm:$0x1] %v2036
        %v2038 = vld [vmem:[%s235 + $0x34] sm:$0x1]
        %v2039 = vsel %vm1407, %v2009, %v2038
        %2040 = vst [vmem:[%s235 + $0x34] sm:$0x1] %v2039
        %v2041 = vld [vmem:[%s235 + $0x3c] sm:$0x1]
        %v2042 = vsel %vm1407, %v2011, %v2041
        %2043 = vst [vmem:[%s235 + $0x3c] sm:$0x1] %v2042
        %2044 = vrot.lane.b32.xlu0 %v1946, 94
        %v2045 = vpop.permute.xlu0 %2044
        %2046 = vrot.lane.b32.xlu0 %v1953, 94
        %v2047 = vpop.permute.xlu0 %2046
        %2048 = vrot.lane.b32.xlu0 %v1960, 94
        %v2049 = vpop.permute.xlu0 %2048
        %2050 = vrot.lane.b32.xlu0 %v1967, 94
        %v2051 = vpop.permute.xlu0 %2050
        %2052 = vrot.lane.b32.xlu0 %v1974, 94
        %v2053 = vpop.permute.xlu0 %2052
        %2054 = vrot.lane.b32.xlu0 %v1981, 94
        %v2055 = vpop.permute.xlu0 %2054
        %2056 = vrot.lane.b32.xlu0 %v1988, 94
        %v2057 = vpop.permute.xlu0 %2056
        %2058 = vrot.lane.b32.xlu0 %v1995, 94
        %v2059 = vpop.permute.xlu0 %2058
        %v2068 = vld [vmem:[%s235 + $0x4] sm:$0x1]
        %v2069 = vsel %vm1457, %v2045, %v2068
        %2070 = vst [vmem:[%s235 + $0x4] sm:$0x1] %v2069
        %v2071 = vld [vmem:[%s235 + $0xc] sm:$0x1]
        %v2072 = vsel %vm1457, %v2047, %v2071
        %2073 = vst [vmem:[%s235 + $0xc] sm:$0x1] %v2072
        %v2074 = vld [vmem:[%s235 + $0x14] sm:$0x1]
        %v2075 = vsel %vm1457, %v2049, %v2074
        %2076 = vst [vmem:[%s235 + $0x14] sm:$0x1] %v2075
        %v2077 = vld [vmem:[%s235 + $0x1c] sm:$0x1]
        %v2078 = vsel %vm1457, %v2051, %v2077
        %2079 = vst [vmem:[%s235 + $0x1c] sm:$0x1] %v2078
        %v2080 = vld [vmem:[%s235 + $0x24] sm:$0x1]
        %v2081 = vsel %vm1457, %v2053, %v2080
        %2082 = vst [vmem:[%s235 + $0x24] sm:$0x1] %v2081
        %v2083 = vld [vmem:[%s235 + $0x2c] sm:$0x1]
        %v2084 = vsel %vm1457, %v2055, %v2083
        %2085 = vst [vmem:[%s235 + $0x2c] sm:$0x1] %v2084
        %v2086 = vld [vmem:[%s235 + $0x34] sm:$0x1]
        %v2087 = vsel %vm1457, %v2057, %v2086
        %2088 = vst [vmem:[%s235 + $0x34] sm:$0x1] %v2087
        %v2089 = vld [vmem:[%s235 + $0x3c] sm:$0x1]
        %v2090 = vsel %vm1457, %v2059, %v2089
        %2091 = vst [vmem:[%s235 + $0x3c] sm:$0x1] %v2090
        %2092 = vrot.lane.b32.xlu0 %v1946, 76
        %v2093 = vpop.permute.xlu0 %2092
        %2094 = vrot.lane.b32.xlu0 %v1953, 76
        %v2095 = vpop.permute.xlu0 %2094
        %2096 = vrot.lane.b32.xlu0 %v1960, 76
        %v2097 = vpop.permute.xlu0 %2096
        %2098 = vrot.lane.b32.xlu0 %v1967, 76
        %v2099 = vpop.permute.xlu0 %2098
        %2100 = vrot.lane.b32.xlu0 %v1974, 76
        %v2101 = vpop.permute.xlu0 %2100
        %2102 = vrot.lane.b32.xlu0 %v1981, 76
        %v2103 = vpop.permute.xlu0 %2102
        %2104 = vrot.lane.b32.xlu0 %v1988, 76
        %v2105 = vpop.permute.xlu0 %2104
        %2106 = vrot.lane.b32.xlu0 %v1995, 76
        %v2107 = vpop.permute.xlu0 %2106
        %v2116 = vld [vmem:[%s235 + $0x4] sm:$0x2]
        %v2117 = vsel %vm1508, %v2093, %v2116
        %2118 = vst [vmem:[%s235 + $0x4] sm:$0x2] %v2117
        %v2119 = vld [vmem:[%s235 + $0xc] sm:$0x2]
        %v2120 = vsel %vm1508, %v2095, %v2119
        %2121 = vst [vmem:[%s235 + $0xc] sm:$0x2] %v2120
        %v2122 = vld [vmem:[%s235 + $0x14] sm:$0x2]
        %v2123 = vsel %vm1508, %v2097, %v2122
        %2124 = vst [vmem:[%s235 + $0x14] sm:$0x2] %v2123
        %v2125 = vld [vmem:[%s235 + $0x1c] sm:$0x2]
        %v2126 = vsel %vm1508, %v2099, %v2125
        %2127 = vst [vmem:[%s235 + $0x1c] sm:$0x2] %v2126
        %v2128 = vld [vmem:[%s235 + $0x24] sm:$0x2]
        %v2129 = vsel %vm1508, %v2101, %v2128
        %2130 = vst [vmem:[%s235 + $0x24] sm:$0x2] %v2129
        %v2131 = vld [vmem:[%s235 + $0x2c] sm:$0x2]
        %v2132 = vsel %vm1508, %v2103, %v2131
        %2133 = vst [vmem:[%s235 + $0x2c] sm:$0x2] %v2132
        %v2134 = vld [vmem:[%s235 + $0x34] sm:$0x2]
        %v2135 = vsel %vm1508, %v2105, %v2134
        %2136 = vst [vmem:[%s235 + $0x34] sm:$0x2] %v2135
        %v2137 = vld [vmem:[%s235 + $0x3c] sm:$0x2]
        %v2138 = vsel %vm1508, %v2107, %v2137
        %2139 = vst [vmem:[%s235 + $0x3c] sm:$0x2] %v2138
        %2140 = vrot.lane.b32.xlu0 %v1946, 58
        %v2141 = vpop.permute.xlu0 %2140
        %2142 = vrot.lane.b32.xlu0 %v1953, 58
        %v2143 = vpop.permute.xlu0 %2142
        %2144 = vrot.lane.b32.xlu0 %v1960, 58
        %v2145 = vpop.permute.xlu0 %2144
        %2146 = vrot.lane.b32.xlu0 %v1967, 58
        %v2147 = vpop.permute.xlu0 %2146
        %2148 = vrot.lane.b32.xlu0 %v1974, 58
        %v2149 = vpop.permute.xlu0 %2148
        %2150 = vrot.lane.b32.xlu0 %v1981, 58
        %v2151 = vpop.permute.xlu0 %2150
        %2152 = vrot.lane.b32.xlu0 %v1988, 58
        %v2153 = vpop.permute.xlu0 %2152
        %2154 = vrot.lane.b32.xlu0 %v1995, 58
        %v2155 = vpop.permute.xlu0 %2154
        %v2164 = vld [vmem:[%s235 + $0x4] sm:$0x2]
        %v2165 = vsel %vm1558, %v2141, %v2164
        %2166 = vst [vmem:[%s235 + $0x4] sm:$0x2] %v2165
        %v2167 = vld [vmem:[%s235 + $0xc] sm:$0x2]
        %v2168 = vsel %vm1558, %v2143, %v2167
        %2169 = vst [vmem:[%s235 + $0xc] sm:$0x2] %v2168
        %v2170 = vld [vmem:[%s235 + $0x14] sm:$0x2]
        %v2171 = vsel %vm1558, %v2145, %v2170
        %2172 = vst [vmem:[%s235 + $0x14] sm:$0x2] %v2171
        %v2173 = vld [vmem:[%s235 + $0x1c] sm:$0x2]
        %v2174 = vsel %vm1558, %v2147, %v2173
        %2175 = vst [vmem:[%s235 + $0x1c] sm:$0x2] %v2174
        %v2176 = vld [vmem:[%s235 + $0x24] sm:$0x2]
        %v2177 = vsel %vm1558, %v2149, %v2176
        %2178 = vst [vmem:[%s235 + $0x24] sm:$0x2] %v2177
        %v2179 = vld [vmem:[%s235 + $0x2c] sm:$0x2]
        %v2180 = vsel %vm1558, %v2151, %v2179
        %2181 = vst [vmem:[%s235 + $0x2c] sm:$0x2] %v2180
        %v2182 = vld [vmem:[%s235 + $0x34] sm:$0x2]
        %v2183 = vsel %vm1558, %v2153, %v2182
        %2184 = vst [vmem:[%s235 + $0x34] sm:$0x2] %v2183
        %v2185 = vld [vmem:[%s235 + $0x3c] sm:$0x2]
        %v2186 = vsel %vm1558, %v2155, %v2185
        %2187 = vst [vmem:[%s235 + $0x3c] sm:$0x2] %v2186
        %2188 = vrot.lane.b32.xlu0 %v1946, 40
        %v2189 = vpop.permute.xlu0 %2188
        %2190 = vrot.lane.b32.xlu0 %v1953, 40
        %v2191 = vpop.permute.xlu0 %2190
        %2192 = vrot.lane.b32.xlu0 %v1960, 40
        %v2193 = vpop.permute.xlu0 %2192
        %2194 = vrot.lane.b32.xlu0 %v1967, 40
        %v2195 = vpop.permute.xlu0 %2194
        %2196 = vrot.lane.b32.xlu0 %v1974, 40
        %v2197 = vpop.permute.xlu0 %2196
        %2198 = vrot.lane.b32.xlu0 %v1981, 40
        %v2199 = vpop.permute.xlu0 %2198
        %2200 = vrot.lane.b32.xlu0 %v1988, 40
        %v2201 = vpop.permute.xlu0 %2200
        %2202 = vrot.lane.b32.xlu0 %v1995, 40
        %v2203 = vpop.permute.xlu0 %2202
        %v2212 = vld [vmem:[%s235 + $0x4] sm:$0x4]
        %v2213 = vsel %vm1609, %v2189, %v2212
        %2214 = vst [vmem:[%s235 + $0x4] sm:$0x4] %v2213
        %v2215 = vld [vmem:[%s235 + $0xc] sm:$0x4]
        %v2216 = vsel %vm1609, %v2191, %v2215
        %2217 = vst [vmem:[%s235 + $0xc] sm:$0x4] %v2216
        %v2218 = vld [vmem:[%s235 + $0x14] sm:$0x4]
        %v2219 = vsel %vm1609, %v2193, %v2218
        %2220 = vst [vmem:[%s235 + $0x14] sm:$0x4] %v2219
        %v2221 = vld [vmem:[%s235 + $0x1c] sm:$0x4]
        %v2222 = vsel %vm1609, %v2195, %v2221
        %2223 = vst [vmem:[%s235 + $0x1c] sm:$0x4] %v2222
        %v2224 = vld [vmem:[%s235 + $0x24] sm:$0x4]
        %v2225 = vsel %vm1609, %v2197, %v2224
        %2226 = vst [vmem:[%s235 + $0x24] sm:$0x4] %v2225
        %v2227 = vld [vmem:[%s235 + $0x2c] sm:$0x4]
        %v2228 = vsel %vm1609, %v2199, %v2227
        %2229 = vst [vmem:[%s235 + $0x2c] sm:$0x4] %v2228
        %v2230 = vld [vmem:[%s235 + $0x34] sm:$0x4]
        %v2231 = vsel %vm1609, %v2201, %v2230
        %2232 = vst [vmem:[%s235 + $0x34] sm:$0x4] %v2231
        %v2233 = vld [vmem:[%s235 + $0x3c] sm:$0x4]
        %v2234 = vsel %vm1609, %v2203, %v2233
        %2235 = vst [vmem:[%s235 + $0x3c] sm:$0x4] %v2234
        %2236 = vrot.lane.b32.xlu0 %v1946, 22
        %v2237 = vpop.permute.xlu0 %2236
        %2238 = vrot.lane.b32.xlu0 %v1953, 22
        %v2239 = vpop.permute.xlu0 %2238
        %2240 = vrot.lane.b32.xlu0 %v1960, 22
        %v2241 = vpop.permute.xlu0 %2240
        %2242 = vrot.lane.b32.xlu0 %v1967, 22
        %v2243 = vpop.permute.xlu0 %2242
        %2244 = vrot.lane.b32.xlu0 %v1974, 22
        %v2245 = vpop.permute.xlu0 %2244
        %2246 = vrot.lane.b32.xlu0 %v1981, 22
        %v2247 = vpop.permute.xlu0 %2246
        %2248 = vrot.lane.b32.xlu0 %v1988, 22
        %v2249 = vpop.permute.xlu0 %2248
        %2250 = vrot.lane.b32.xlu0 %v1995, 22
        %v2251 = vpop.permute.xlu0 %2250
        %v2260 = vld [vmem:[%s235 + $0x4] sm:$0x4]
        %v2261 = vsel %vm1659, %v2237, %v2260
        %2262 = vst [vmem:[%s235 + $0x4] sm:$0x4] %v2261
        %v2263 = vld [vmem:[%s235 + $0xc] sm:$0x4]
        %v2264 = vsel %vm1659, %v2239, %v2263
        %2265 = vst [vmem:[%s235 + $0xc] sm:$0x4] %v2264
        %v2266 = vld [vmem:[%s235 + $0x14] sm:$0x4]
        %v2267 = vsel %vm1659, %v2241, %v2266
        %2268 = vst [vmem:[%s235 + $0x14] sm:$0x4] %v2267
        %v2269 = vld [vmem:[%s235 + $0x1c] sm:$0x4]
        %v2270 = vsel %vm1659, %v2243, %v2269
        %2271 = vst [vmem:[%s235 + $0x1c] sm:$0x4] %v2270
        %v2272 = vld [vmem:[%s235 + $0x24] sm:$0x4]
        %v2273 = vsel %vm1659, %v2245, %v2272
        %2274 = vst [vmem:[%s235 + $0x24] sm:$0x4] %v2273
        %v2275 = vld [vmem:[%s235 + $0x2c] sm:$0x4]
        %v2276 = vsel %vm1659, %v2247, %v2275
        %2277 = vst [vmem:[%s235 + $0x2c] sm:$0x4] %v2276
        %v2278 = vld [vmem:[%s235 + $0x34] sm:$0x4]
        %v2279 = vsel %vm1659, %v2249, %v2278
        %2280 = vst [vmem:[%s235 + $0x34] sm:$0x4] %v2279
        %v2281 = vld [vmem:[%s235 + $0x3c] sm:$0x4]
        %v2282 = vsel %vm1659, %v2251, %v2281
        %2283 = vst [vmem:[%s235 + $0x3c] sm:$0x4] %v2282
        %v2285 = vcombine.low %v1298, %v1299
        %v2287 = vunpack.c.l.s4 1966171168
        %v2288 = vunpack.c.0.s8 %v2287
        %v2289 = vlaneseq
        %v2290 = vshrl.u32 %v2289, 7
        %v2291 = vsub.s32 %v2288, %v2290
        %v2292 = vrot.slane %v2285, %v2291
        %v2293 = vcombine.high %v2292, %v2292
        %v2295 = vunpack.c.l.s4 1966171168
        %v2296 = vunpack.c.0.s8 %v2295
        %v2297 = vlaneseq
        %v2298 = vshrl.u32 %v2297, 7
        %v2299 = vsub.s32 %v2296, %v2298
        %v2300 = vrot.slane %v2292, %v2299
        %v2302 = vunpack.c.l.s4 1966171168
        %v2303 = vunpack.c.0.s8 %v2302
        %v2304 = vlaneseq
        %v2305 = vshrl.u32 %v2304, 7
        %v2306 = vsub.s32 %v2303, %v2305
        %v2307 = vrot.slane %v2293, %v2306
        %v2308 = vcombine.high %v2300, %v2300
        %v2309 = vcombine.high %v2307, %v2307
        %v2310 = vunpack.i.l.s16 %v2300
        %v2311 = vunpack.i.h.s16 %v2300
        %v2312 = vunpack.i.l.s16 %v2307
        %v2313 = vunpack.i.h.s16 %v2307
        %v2314 = vunpack.i.l.s16 %v2308
        %v2315 = vunpack.i.h.s16 %v2308
        %v2316 = vunpack.i.l.s16 %v2309
        %v2317 = vunpack.i.h.s16 %v2309
        %v2318 = vpack.i.b16 %v2310, %v2310
        %v2319 = vpack.i.b16 %v2311, %v2311
        %v2320 = vpack.i.b16 %v2312, %v2312
        %v2321 = vpack.i.b16 %v2313, %v2313
        %v2322 = vpack.i.b16 %v2314, %v2314
        %v2323 = vpack.i.b16 %v2315, %v2315
        %v2324 = vpack.i.b16 %v2316, %v2316
        %v2325 = vpack.i.b16 %v2317, %v2317
        %v2327 = vunpack.c.l.s4 286326784
        %v2328 = vunpack.c.0.s8 %v2327
        %v2329 = vlaneseq
        %v2330 = vshrl.u32 %v2329, 7
        %v2331 = vsub.s32 %v2328, %v2330
        %v2332 = vrot.slane %v2318, %v2331
        %v2334 = vunpack.c.l.s4 286326784
        %v2335 = vunpack.c.0.s8 %v2334
        %v2336 = vlaneseq
        %v2337 = vshrl.u32 %v2336, 7
        %v2338 = vsub.s32 %v2335, %v2337
        %v2339 = vrot.slane %v2319, %v2338
        %v2341 = vunpack.c.l.s4 286326784
        %v2342 = vunpack.c.0.s8 %v2341
        %v2343 = vlaneseq
        %v2344 = vshrl.u32 %v2343, 7
        %v2345 = vsub.s32 %v2342, %v2344
        %v2346 = vrot.slane %v2320, %v2345
        %v2348 = vunpack.c.l.s4 286326784
        %v2349 = vunpack.c.0.s8 %v2348
        %v2350 = vlaneseq
        %v2351 = vshrl.u32 %v2350, 7
        %v2352 = vsub.s32 %v2349, %v2351
        %v2353 = vrot.slane %v2321, %v2352
        %v2355 = vunpack.c.l.s4 286326784
        %v2356 = vunpack.c.0.s8 %v2355
        %v2357 = vlaneseq
        %v2358 = vshrl.u32 %v2357, 7
        %v2359 = vsub.s32 %v2356, %v2358
        %v2360 = vrot.slane %v2322, %v2359
        %v2362 = vunpack.c.l.s4 286326784
        %v2363 = vunpack.c.0.s8 %v2362
        %v2364 = vlaneseq
        %v2365 = vshrl.u32 %v2364, 7
        %v2366 = vsub.s32 %v2363, %v2365
        %v2367 = vrot.slane %v2323, %v2366
        %v2369 = vunpack.c.l.s4 286326784
        %v2370 = vunpack.c.0.s8 %v2369
        %v2371 = vlaneseq
        %v2372 = vshrl.u32 %v2371, 7
        %v2373 = vsub.s32 %v2370, %v2372
        %v2374 = vrot.slane %v2324, %v2373
        %v2376 = vunpack.c.l.s4 286326784
        %v2377 = vunpack.c.0.s8 %v2376
        %v2378 = vlaneseq
        %v2379 = vshrl.u32 %v2378, 7
        %v2380 = vsub.s32 %v2377, %v2379
        %v2381 = vrot.slane %v2325, %v2380
        %2382 = vrot.lane.b32.xlu0 %v2332, 4
        %v2383 = vpop.permute.xlu0 %2382
        %2384 = vrot.lane.b32.xlu0 %v2339, 4
        %v2385 = vpop.permute.xlu0 %2384
        %2386 = vrot.lane.b32.xlu0 %v2346, 4
        %v2387 = vpop.permute.xlu0 %2386
        %2388 = vrot.lane.b32.xlu0 %v2353, 4
        %v2389 = vpop.permute.xlu0 %2388
        %2390 = vrot.lane.b32.xlu0 %v2360, 4
        %v2391 = vpop.permute.xlu0 %2390
        %2392 = vrot.lane.b32.xlu0 %v2367, 4
        %v2393 = vpop.permute.xlu0 %2392
        %2394 = vrot.lane.b32.xlu0 %v2374, 4
        %v2395 = vpop.permute.xlu0 %2394
        %2396 = vrot.lane.b32.xlu0 %v2381, 4
        %v2397 = vpop.permute.xlu0 %2396
        %v2398 = vrot.slane %v2383, 4
        %v2399 = vrot.slane %v2385, 4
        %v2400 = vrot.slane %v2387, 4
        %v2401 = vrot.slane %v2389, 4
        %v2402 = vrot.slane %v2391, 4
        %v2403 = vrot.slane %v2393, 4
        %v2404 = vrot.slane %v2395, 4
        %v2405 = vrot.slane %v2397, 4
        %vm2406 = vcmask 31744
        %v2407 = vsel %vm2406, %v2383, %v2398
        %v2408 = vsel %vm2406, %v2385, %v2399
        %v2409 = vsel %vm2406, %v2387, %v2400
        %v2410 = vsel %vm2406, %v2389, %v2401
        %v2411 = vsel %vm2406, %v2391, %v2402
        %v2412 = vsel %vm2406, %v2393, %v2403
        %v2413 = vsel %vm2406, %v2395, %v2404
        %v2414 = vsel %vm2406, %v2397, %v2405
        %v2423 = vld [vmem:[%s235 + $0x4] sm:$0x8]
        %v2424 = vsel %vm1710, %v2407, %v2423
        %2425 = vst [vmem:[%s235 + $0x4] sm:$0x8] %v2424
        %v2426 = vld [vmem:[%s235 + $0xc] sm:$0x8]
        %v2427 = vsel %vm1710, %v2408, %v2426
        %2428 = vst [vmem:[%s235 + $0xc] sm:$0x8] %v2427
        %v2429 = vld [vmem:[%s235 + $0x14] sm:$0x8]
        %v2430 = vsel %vm1710, %v2409, %v2429
        %2431 = vst [vmem:[%s235 + $0x14] sm:$0x8] %v2430
        %v2432 = vld [vmem:[%s235 + $0x1c] sm:$0x8]
        %v2433 = vsel %vm1710, %v2410, %v2432
        %2434 = vst [vmem:[%s235 + $0x1c] sm:$0x8] %v2433
        %v2435 = vld [vmem:[%s235 + $0x24] sm:$0x8]
        %v2436 = vsel %vm1710, %v2411, %v2435
        %2437 = vst [vmem:[%s235 + $0x24] sm:$0x8] %v2436
        %v2438 = vld [vmem:[%s235 + $0x2c] sm:$0x8]
        %v2439 = vsel %vm1710, %v2412, %v2438
        %2440 = vst [vmem:[%s235 + $0x2c] sm:$0x8] %v2439
        %v2441 = vld [vmem:[%s235 + $0x34] sm:$0x8]
        %v2442 = vsel %vm1710, %v2413, %v2441
        %2443 = vst [vmem:[%s235 + $0x34] sm:$0x8] %v2442
        %v2444 = vld [vmem:[%s235 + $0x3c] sm:$0x8]
        %v2445 = vsel %vm1710, %v2414, %v2444
        %2446 = vst [vmem:[%s235 + $0x3c] sm:$0x8] %v2445
        %v2448 = vunpack.c.l.s4 1966171168
        %v2449 = vunpack.c.0.s8 %v2448
        %v2450 = vlaneseq
        %v2451 = vshrl.u32 %v2450, 7
        %v2452 = vsub.s32 %v2449, %v2451
        %v2453 = vrot.slane %v1299, %v2452
        %v2454 = vcombine.high %v2453, %v2453
        %v2456 = vunpack.c.l.s4 1966171168
        %v2457 = vunpack.c.0.s8 %v2456
        %v2458 = vlaneseq
        %v2459 = vshrl.u32 %v2458, 7
        %v2460 = vsub.s32 %v2457, %v2459
        %v2461 = vrot.slane %v2453, %v2460
        %v2463 = vunpack.c.l.s4 1966171168
        %v2464 = vunpack.c.0.s8 %v2463
        %v2465 = vlaneseq
        %v2466 = vshrl.u32 %v2465, 7
        %v2467 = vsub.s32 %v2464, %v2466
        %v2468 = vrot.slane %v2454, %v2467
        %v2469 = vcombine.high %v2461, %v2461
        %v2470 = vcombine.high %v2468, %v2468
        %v2471 = vunpack.i.l.s16 %v2461
        %v2472 = vunpack.i.h.s16 %v2461
        %v2473 = vunpack.i.l.s16 %v2468
        %v2474 = vunpack.i.h.s16 %v2468
        %v2475 = vunpack.i.l.s16 %v2469
        %v2476 = vunpack.i.h.s16 %v2469
        %v2477 = vunpack.i.l.s16 %v2470
        %v2478 = vunpack.i.h.s16 %v2470
        %v2479 = vpack.i.b16 %v2471, %v2471
        %v2480 = vpack.i.b16 %v2472, %v2472
        %v2481 = vpack.i.b16 %v2473, %v2473
        %v2482 = vpack.i.b16 %v2474, %v2474
        %v2483 = vpack.i.b16 %v2475, %v2475
        %v2484 = vpack.i.b16 %v2476, %v2476
        %v2485 = vpack.i.b16 %v2477, %v2477
        %v2486 = vpack.i.b16 %v2478, %v2478
        %v2488 = vunpack.c.l.s4 286326784
        %v2489 = vunpack.c.0.s8 %v2488
        %v2490 = vlaneseq
        %v2491 = vshrl.u32 %v2490, 7
        %v2492 = vsub.s32 %v2489, %v2491
        %v2493 = vrot.slane %v2479, %v2492
        %v2495 = vunpack.c.l.s4 286326784
        %v2496 = vunpack.c.0.s8 %v2495
        %v2497 = vlaneseq
        %v2498 = vshrl.u32 %v2497, 7
        %v2499 = vsub.s32 %v2496, %v2498
        %v2500 = vrot.slane %v2480, %v2499
        %v2502 = vunpack.c.l.s4 286326784
        %v2503 = vunpack.c.0.s8 %v2502
        %v2504 = vlaneseq
        %v2505 = vshrl.u32 %v2504, 7
        %v2506 = vsub.s32 %v2503, %v2505
        %v2507 = vrot.slane %v2481, %v2506
        %v2509 = vunpack.c.l.s4 286326784
        %v2510 = vunpack.c.0.s8 %v2509
        %v2511 = vlaneseq
        %v2512 = vshrl.u32 %v2511, 7
        %v2513 = vsub.s32 %v2510, %v2512
        %v2514 = vrot.slane %v2482, %v2513
        %v2516 = vunpack.c.l.s4 286326784
        %v2517 = vunpack.c.0.s8 %v2516
        %v2518 = vlaneseq
        %v2519 = vshrl.u32 %v2518, 7
        %v2520 = vsub.s32 %v2517, %v2519
        %v2521 = vrot.slane %v2483, %v2520
        %v2523 = vunpack.c.l.s4 286326784
        %v2524 = vunpack.c.0.s8 %v2523
        %v2525 = vlaneseq
        %v2526 = vshrl.u32 %v2525, 7
        %v2527 = vsub.s32 %v2524, %v2526
        %v2528 = vrot.slane %v2484, %v2527
        %v2530 = vunpack.c.l.s4 286326784
        %v2531 = vunpack.c.0.s8 %v2530
        %v2532 = vlaneseq
        %v2533 = vshrl.u32 %v2532, 7
        %v2534 = vsub.s32 %v2531, %v2533
        %v2535 = vrot.slane %v2485, %v2534
        %v2537 = vunpack.c.l.s4 286326784
        %v2538 = vunpack.c.0.s8 %v2537
        %v2539 = vlaneseq
        %v2540 = vshrl.u32 %v2539, 7
        %v2541 = vsub.s32 %v2538, %v2540
        %v2542 = vrot.slane %v2486, %v2541
        %2543 = vrot.lane.b32.xlu0 %v2493, 114
        %v2544 = vpop.permute.xlu0 %2543
        %2545 = vrot.lane.b32.xlu0 %v2500, 114
        %v2546 = vpop.permute.xlu0 %2545
        %2547 = vrot.lane.b32.xlu0 %v2507, 114
        %v2548 = vpop.permute.xlu0 %2547
        %2549 = vrot.lane.b32.xlu0 %v2514, 114
        %v2550 = vpop.permute.xlu0 %2549
        %2551 = vrot.lane.b32.xlu0 %v2521, 114
        %v2552 = vpop.permute.xlu0 %2551
        %2553 = vrot.lane.b32.xlu0 %v2528, 114
        %v2554 = vpop.permute.xlu0 %2553
        %2555 = vrot.lane.b32.xlu0 %v2535, 114
        %v2556 = vpop.permute.xlu0 %2555
        %2557 = vrot.lane.b32.xlu0 %v2542, 114
        %v2558 = vpop.permute.xlu0 %2557
        %v2567 = vld [vmem:[%s235 + $0x4] sm:$0x8]
        %v2568 = vsel %vm1875, %v2544, %v2567
        %2569 = vst [vmem:[%s235 + $0x4] sm:$0x8] %v2568
        %v2570 = vld [vmem:[%s235 + $0xc] sm:$0x8]
        %v2571 = vsel %vm1875, %v2546, %v2570
        %2572 = vst [vmem:[%s235 + $0xc] sm:$0x8] %v2571
        %v2573 = vld [vmem:[%s235 + $0x14] sm:$0x8]
        %v2574 = vsel %vm1875, %v2548, %v2573
        %2575 = vst [vmem:[%s235 + $0x14] sm:$0x8] %v2574
        %v2576 = vld [vmem:[%s235 + $0x1c] sm:$0x8]
        %v2577 = vsel %vm1875, %v2550, %v2576
        %2578 = vst [vmem:[%s235 + $0x1c] sm:$0x8] %v2577
        %v2579 = vld [vmem:[%s235 + $0x24] sm:$0x8]
        %v2580 = vsel %vm1875, %v2552, %v2579
        %2581 = vst [vmem:[%s235 + $0x24] sm:$0x8] %v2580
        %v2582 = vld [vmem:[%s235 + $0x2c] sm:$0x8]
        %v2583 = vsel %vm1875, %v2554, %v2582
        %2584 = vst [vmem:[%s235 + $0x2c] sm:$0x8] %v2583
        %v2585 = vld [vmem:[%s235 + $0x34] sm:$0x8]
        %v2586 = vsel %vm1875, %v2556, %v2585
        %2587 = vst [vmem:[%s235 + $0x34] sm:$0x8] %v2586
        %v2588 = vld [vmem:[%s235 + $0x3c] sm:$0x8]
        %v2589 = vsel %vm1875, %v2558, %v2588
        %2590 = vst [vmem:[%s235 + $0x3c] sm:$0x8] %v2589
        %s2591 = sand.u32 %s129, 1
        %s2592 = scalar_lea.sflag [#allocation4], %s2591
        %s2593 = sand.u32 %s129, 1
        %s2594 = smul.addr %s2593, 64
        %s2595 = scalar_lea.vmem [#allocation5], %s2594
        // Predicated region
        $region37: #{tpu_custom_call.1} parent=31 // pred_check
          %p2596 = pneg %p139
        $region38: #{tpu_custom_call.1} parent=31 // pred_check_branch
          %2598 = sbr.rel (%p2596) target = $region40
        $region39: #{tpu_custom_call.1} parent=31 // pred_region
          %s2599 = smul.u32 8, %s26
          %s2600 = smul.u32 2, %s27
          %s2602 = ssub.s32 1024, 1024
          %2603 = vsyncadd %s2592, %s2602
          %s2604 = smul.addr %s2599, 2
          %s2605 = sadd.s32 %s2600, %s2604
          %s2606 = smul.addr %s25, 16
          %s2607 = sadd.s32 %s2605, %s2606
          %s2608 = smul.addr %s2607, 64
          %s2609 = scalar_lea.hbm %s3, %s2608
          %s2610 = sshll.u32 %s2595, 4
          %s2611 = int_to_ptr.vmem [resolvable:$true] %s2610
          %2616 = dma.vmem_to_hbm [thread:$0]  %s2611, 1024, %s2609, %s2592, 64, 64, 4
        $region40: #{tpu_custom_call.1} parent=31 // pred_fallthru
          _
      $region32: #{tpu_custom_call.1} parent=5 // pred_fallthru
        _
      %p2617 = scmp.le.s32.totalorder 2, %s15
      // Predicated region
      $region41: #{tpu_custom_call.1} parent=5 // pred_check
        %p2618 = pneg %p2617
      $region42: #{tpu_custom_call.1} parent=5 // pred_check_branch
        %2620 = sbr.rel (%p2618) target = $region44
      $region43: #{tpu_custom_call.1} parent=5 // pred_region
        %s2621 = ssub.s32 %s15, 2
        // Predicated region
        $region45: #{tpu_custom_call.1} parent=43 // pred_check
          %p2622 = pneg %p145
        $region46: #{tpu_custom_call.1} parent=43 // pred_check_branch
          %2624 = sbr.rel (%p2622) target = $region48
        $region47: #{tpu_custom_call.1} parent=43 // pred_region
          %s2625 = sand.u32 %s130, 1
          %s2626 = scalar_lea.sflag [#allocation4], %s2625
          %s2627 = sand.u32 %s130, 1
          %s2628 = smul.addr %s2627, 64
          %s2629 = scalar_lea.vmem [#allocation5], %s2628
          %2630 = dma.done %s2626, 1024
        $region48: #{tpu_custom_call.1} parent=43 // pred_fallthru
          _
      $region44: #{tpu_custom_call.1} parent=5 // pred_fallthru
        _
    $region6: #{tpu_custom_call.1} parent=1 // loop_footer
      %s19 = sadd.s32 1, %s15
    $region7: #{tpu_custom_call.1} parent=1 // loop_footer_branch
      %14 = sbr.rel target = $region3
    $region8: #{tpu_custom_call.1} parent=1 // loop_exit
      _
    %2631 = vsyncpa [#allocation3], 1
    %s2632 = scalar_lea.sflag [#allocation3], 1
    %2633 = vsyncpa %s2632, 1
    %2634 = vsyncpa [#allocation4], 1
    %s2635 = scalar_lea.sflag [#allocation4], 1
    %2636 = vsyncpa %s2635, 1

</llo_original>
